<compile_context>
chip_gen: v7x
topology: tpu7x:2x2x1
jax: 0.10.0
libtpu: 0.0.40
codegen_flags: <defaults>
</compile_context>

<pallas_src>
import jax
import jax.numpy as jnp
from jax.experimental import pallas as pl
from jax.experimental.pallas import tpu as pltpu


# ----------------------------- Pallas kernel ------------------------------ #

def bigru_kernel(x_ref, wi_ref, bi_ref, whrz_ref, whn_ref, bhn_ref,
                 out_ref, h_ref, gi_ref):
    """Fused bidirectional GRU (both directions in one serial chain).

    x_ref    : (T*Bp, 2E) bf16  time-major inputs, cols [x_t | x_{T-1-t}]
    wi_ref   : (2E, 6H)   bf16  block-diag fused input weight,
                                 gate-major cols [rf rb zf zb nf nb]
    bi_ref   : (1, 6H)    f32   folded bias (b_ih+b_hh for r/z, b_ih for n)
    whrz_ref : (2H, 4H)   bf16  block-diag recurrent weight, r/z columns
    whn_ref  : (2H, 2H)   bf16  block-diag recurrent weight, n columns
    bhn_ref  : (1, 2H)    f32   n-gate hidden bias [b_hn_f | b_hn_b]
    out_ref  : (T, Bp, 2H) f32  combined outputs [h_f(t) | h_b(t)]
    h_ref    : (Bp, 2H)   f32   final hidden states [h_f | h_b]
    gi_ref   : (T*Bp, 6H) f32   VMEM scratch, hoisted input projections
    """
    T, Bp, H2 = out_ref.shape
    H = H2 // 2

    # ---- hoisted: every timestep's input projection, both directions, merged,
    # one matmul (off the serial critical path).
    gi_ref[...] = jnp.dot(x_ref[...], wi_ref[...],
                          preferred_element_type=jnp.float32) + bi_ref[...]

    # ---- loop invariants (hoisted; JAX does not CSE broadcasts inside loops) --
    whrz = whrz_ref[...]                                  # stays vreg-resident
    whn = whn_ref[...]
    bhn = jnp.broadcast_to(bhn_ref[...], (Bp, H2))
    lane = jax.lax.broadcasted_iota(jnp.int32, (Bp, H2), 1)
    fwd_half = lane < H                                   # cols <H = forward dir

    # ---- strictly serial recurrence, fully unrolled (T is small & static).
    # Per step: one (Bp,2H)@(2H,4H) + one (Bp,2H)@(2H,2H) bf16 matmul; the r/z
    # sigmoid overlaps the n-column MXU drain.  h is a vreg-resident carry.
    h = jnp.zeros((Bp, H2), jnp.float32)                  # [h_f | h_b]
    hs = []
    for t in range(T):
        gi_t = gi_ref[pl.ds(t * Bp, Bp), :]               # (Bp, 6H), pre-merged
        hb = h.astype(jnp.bfloat16)
        gh_rz = jnp.dot(hb, whrz, preferred_element_type=jnp.float32)  # (Bp,4H)
        gh_n = jnp.dot(hb, whn, preferred_element_type=jnp.float32)    # (Bp,2H)

        rz = jax.nn.sigmoid(gi_t[:, :4 * H] + gh_rz)      # 4H lanes wide
        r = rz[:, :H2]
        z = rz[:, H2:]
        n = jnp.tanh(gi_t[:, 4 * H:] + r * (gh_n + bhn))
        h = (1.0 - z) * n + z * h
        hs.append(h)

    # ---- deferred, batched writeback (off the serial chain).
    # out[t] = [h_f from step t | h_b from step T-1-t]  -> single lane-select.
    for t in range(T):
        out_ref[t] = jnp.where(fwd_half, hs[t], hs[T - 1 - t])
    h_ref[...] = hs[T - 1]                                # final [h_f | h_b]


# ------------------------- parameter fusion (wrapper) ---------------------- #

def _fuse_gru_params(params):
    """Pack the two PyTorch-layout GRU directions into fused, gate-major,
    MXU-friendly operands (bf16 weights, f32 biases)."""
    f32 = jnp.float32
    H = params["w_hh_f"].shape[1]
    E = params["w_ih_f"].shape[1]

    def wgates(w):                       # (3H, X) -> three (X, H) blocks [r,z,n]
        wt = w.astype(f32).T
        return wt[:, 0:H], wt[:, H:2 * H], wt[:, 2 * H:3 * H]

    def bgates(b):
        b = b.astype(f32)
        return b[0:H], b[H:2 * H], b[2 * H:3 * H]

    wir_f, wiz_f, win_f = wgates(params["w_ih_f"])
    wir_b, wiz_b, win_b = wgates(params["w_ih_b"])
    whr_f, whz_f, whn_f = wgates(params["w_hh_f"])
    whr_b, whz_b, whn_b = wgates(params["w_hh_b"])
    bir_f, biz_f, bin_f = bgates(params["b_ih_f"])
    bir_b, biz_b, bin_b = bgates(params["b_ih_b"])
    bhr_f, bhz_f, bhn_f = bgates(params["b_hh_f"])
    bhr_b, bhz_b, bhn_b = bgates(params["b_hh_b"])

    zE = jnp.zeros((E, H), f32)
    # (2E, 6H) block-diagonal input weight: forward gate columns read the x_t
    # rows (0:E), backward gate columns read the x_{T-1-t} rows (E:2E).
    # Gate-major columns [rf rb zf zb nf nb].
    wi = jnp.concatenate([
        jnp.concatenate([wir_f, zE, wiz_f, zE, win_f, zE], axis=1),
        jnp.concatenate([zE, wir_b, zE, wiz_b, zE, win_b], axis=1)], axis=0)

    # bias folding: r/z get (b_ih + b_hh) up front; n keeps only b_ih here.
    bi = jnp.concatenate([bir_f + bhr_f, bir_b + bhr_b,
                          biz_f + bhz_f, biz_b + bhz_b,
                          bin_f, bin_b])[None, :]

    zH = jnp.zeros((H, H), f32)
    # Block-diagonal recurrent weights (rows [h_f | h_b]), split by column
    # group so the kernel can issue the r/z and n matmuls separately.
    wh_rz = jnp.concatenate([
        jnp.concatenate([whr_f, zH, whz_f, zH], axis=1),
        jnp.concatenate([zH, whr_b, zH, whz_b], axis=1)], axis=0)   # (2H, 4H)
    wh_n = jnp.concatenate([
        jnp.concatenate([whn_f, zH], axis=1),
        jnp.concatenate([zH, whn_b], axis=1)], axis=0)              # (2H, 2H)
    bhn = jnp.concatenate([bhn_f, bhn_b])[None, :]
    return (wi.astype(jnp.bfloat16), bi.astype(f32),
            wh_rz.astype(jnp.bfloat16), wh_n.astype(jnp.bfloat16),
            bhn.astype(f32))


def bidir_gru_pallas(x_flat, wi, bi, wh_rz, wh_n, bhn, T, Bp):
    H2 = wh_rz.shape[0]
    vmem = pl.BlockSpec(memory_space=pltpu.MemorySpace.VMEM)
    # Whole-array VMEM residency is fine at these sizes; see TODOs at top for
    # time-chunk pipelining at realistic T*Bp (especially on v7x, 64 MiB VMEM).
    return pl.pallas_call(
        bigru_kernel,
        out_shape=(
            jax.ShapeDtypeStruct((T, Bp, H2), jnp.float32),   # combined outputs
            jax.ShapeDtypeStruct((Bp, H2), jnp.float32),      # final hidden
        ),
        in_specs=[vmem] * 6,
        out_specs=(vmem, vmem),
        scratch_shapes=[pltpu.VMEM((T * Bp, 3 * H2), jnp.float32)],
        compiler_params=pltpu.CompilerParams(vmem_limit_bytes=32 * 1024 * 1024),
    )(x_flat, wi, bi, wh_rz, wh_n, bhn)


# ------------------------- forward pass (wrapper) -------------------------- #

def couplets_encode_forward(token_seq, params):
    """Equivalent of CoupletsEncodeModel.forward.

    token_seq: (B, T) int32 tokens.
    Returns (enc_outputs (B, T, 2H), hidden_cat (1, B, 2H)).
    """
    B, T = token_seq.shape
    E = params["embedding"].shape[1]

    # Pad batch to a multiple of 16: 8 satisfies the f32 sublane tile, 16 fills a
    # full bf16 sublane pack for the h matmul operand.  Per-step latency is
    # ~flat in Bp, so batch more sequences per call if the workload allows.
    Bp = max(16, ((B + 15) // 16) * 16)

    # Gather embeddings directly in (T, B) order -> no separate transpose pass.
    emb_tm = jnp.take(params["embedding"], token_seq.T, axis=0).astype(jnp.float32)
    if Bp != B:
        # NOTE: padded rows (B..Bp) see zero embeddings but real biases, so they
        # accumulate bounded garbage hidden state; they are sliced away below and
        # must never be read as real data.
        emb_tm = jnp.pad(emb_tm, ((0, 0), (0, Bp - B), (0, 0)))

    # Pre-merge forward/backward inputs: columns [x_t | x_{T-1-t}].  Against the
    # 2E block-diagonal wi this removes the per-step fwd/bwd lane-select from
    # the recurrence.
    x2 = jnp.concatenate([emb_tm, emb_tm[::-1]], axis=-1)       # (T, Bp, 2E)
    x_flat = x2.reshape(T * Bp, 2 * E).astype(jnp.bfloat16)

    wi, bi, wh_rz, wh_n, bhn = _fuse_gru_params(params)
    out, hcat = bidir_gru_pallas(x_flat, wi, bi, wh_rz, wh_n, bhn, T, Bp)

    enc_outputs = jnp.transpose(out[:, :B, :], (1, 0, 2))       # (B, T, 2H)
    hidden_cat = hcat[:B][None, :, :]                           # (1, B, 2H)
    return enc_outputs, hidden_cat


# --------------------------- pure-JAX reference ---------------------------- #

def _ref_gru_dir(x_tm, w_ih, w_hh, b_ih, b_hh, reverse):
    T, B, E = x_tm.shape
    H = w_hh.shape[1]
    xs = x_tm[::-1] if reverse else x_tm

    def step(h, x_t):
        gi = x_t @ w_ih.T + b_ih
        gh = h @ w_hh.T + b_hh
        r = jax.nn.sigmoid(gi[:, 0:H] + gh[:, 0:H])
        z = jax.nn.sigmoid(gi[:, H:2 * H] + gh[:, H:2 * H])
        n = jnp.tanh(gi[:, 2 * H:] + r * gh[:, 2 * H:])
        h_new = (1.0 - z) * n + z * h
        return h_new, h_new

    h0 = jnp.zeros((B, H), jnp.float32)
    h_last, outs = jax.lax.scan(step, h0, xs)
    if reverse:
        outs = outs[::-1]
    return outs, h_last


def couplets_encode_reference(token_seq, params):
    emb = jnp.take(params["embedding"], token_seq, axis=0)
    x_tm = jnp.transpose(emb, (1, 0, 2)).astype(jnp.float32)
    outf, hf = _ref_gru_dir(x_tm, params["w_ih_f"], params["w_hh_f"],
                            params["b_ih_f"], params["b_hh_f"], reverse=False)
    outb, hb = _ref_gru_dir(x_tm, params["w_ih_b"], params["w_hh_b"],
                            params["b_ih_b"], params["b_hh_b"], reverse=True)
    enc = jnp.transpose(jnp.concatenate([outf, outb], axis=-1), (1, 0, 2))
    hidden_cat = jnp.concatenate([hf, hb], axis=-1)[None, :, :]
    return enc, hidden_cat


# --------------------------------- main ------------------------------------ #

def init_params(key, vocab_size, embedding_dim, hidden_dim):
    ks = jax.random.split(key, 9)
    k = 1.0 / jnp.sqrt(hidden_dim)
    u = lambda kk, shape: jax.random.uniform(kk, shape, jnp.float32, -k, k)
    return {
        "embedding": jax.random.normal(ks[0], (vocab_size, embedding_dim),
                                       jnp.float32),
        # forward direction (PyTorch shapes, gate order [r, z, n])
        "w_ih_f": u(ks[1], (3 * hidden_dim, embedding_dim)),
        "w_hh_f": u(ks[2], (3 * hidden_dim, hidden_dim)),
        "b_ih_f": u(ks[3], (3 * hidden_dim,)),
        "b_hh_f": u(ks[4], (3 * hidden_dim,)),
        # reverse direction
        "w_ih_b": u(ks[5], (3 * hidden_dim, embedding_dim)),
        "w_hh_b": u(ks[6], (3 * hidden_dim, hidden_dim)),
        "b_ih_b": u(ks[7], (3 * hidden_dim,)),
        "b_hh_b": u(ks[8], (3 * hidden_dim,)),
    }


if __name__ == "__main__":
    vocab_size, embedding_dim, hidden_dim = 50, 32, 32
    batch, seq_len = 4, 8

    key = jax.random.PRNGKey(0)
    k_tok, k_par = jax.random.split(key)
    token_seq = jax.random.randint(k_tok, (batch, seq_len), 0, vocab_size,
                                   dtype=jnp.int32)
    params = init_params(k_par, vocab_size, embedding_dim, hidden_dim)

    fwd = jax.jit(couplets_encode_forward)
    enc_outputs, hidden_cat = fwd(token_seq, params)
    jax.block_until_ready((enc_outputs, hidden_cat))

    assert enc_outputs.shape == (batch, seq_len, 2 * hidden_dim)
    assert hidden_cat.shape == (1, batch, 2 * hidden_dim)

    # Tolerance accounts for bf16 MXU operands (accumulation and gating are f32).
    # NOTE: bf16 rounding compounds along the serial chain; validate at
    # production T or raise recurrence operand precision for long couplets.
    ref_enc, ref_hidden = couplets_encode_reference(token_seq, params)
    assert jnp.allclose(enc_outputs, ref_enc, atol=2e-2, rtol=2e-2), (
        float(jnp.max(jnp.abs(enc_outputs - ref_enc))))
    assert jnp.allclose(hidden_cat, ref_hidden, atol=2e-2, rtol=2e-2), (
        float(jnp.max(jnp.abs(hidden_cat - ref_hidden))))

    print("KERNEL_OK")
</pallas_src>

<mosaic_0001>
module attributes {stable_mosaic.version = 11 : i64} {
  func.func @bigru_kernel(%arg0: memref<128x64xbf16, #tpu.memory_space<vmem>>, %arg1: memref<64x192xbf16, #tpu.memory_space<vmem>>, %arg2: memref<1x192xf32, #tpu.memory_space<vmem>>, %arg3: memref<64x128xbf16, #tpu.memory_space<vmem>>, %arg4: memref<64x64xbf16, #tpu.memory_space<vmem>>, %arg5: memref<1x64xf32, #tpu.memory_space<vmem>>, %arg6: memref<8x16x64xf32, #tpu.memory_space<vmem>>, %arg7: memref<16x64xf32, #tpu.memory_space<vmem>>, %arg8: memref<128x192xf32, #tpu.memory_space<vmem>>) attributes {dimension_semantics = [], scalar_prefetch = 0 : i64, scratch_operands = 1 : i64, tpu.core_type = #tpu.core_type<tc>} {
    %c0 = arith.constant 0 : index
    %c0_0 = arith.constant 0 : index
    %0 = vector.load %arg0[%c0, %c0_0] : memref<128x64xbf16, #tpu.memory_space<vmem>>, vector<128x64xbf16>
    %c0_1 = arith.constant 0 : index
    %c0_2 = arith.constant 0 : index
    %1 = vector.load %arg1[%c0_1, %c0_2] : memref<64x192xbf16, #tpu.memory_space<vmem>>, vector<64x192xbf16>
    %cst = arith.constant dense<0.000000e+00> : vector<128x192xf32>
    %2 = tpu.matmul %0, %1, %cst {dimension_numbers = #tpu.dot_dimension_numbers<[1], [0], [0], [1], [0, 0, 1, 1], [], []>} : vector<128x64xbf16>, vector<64x192xbf16>, vector<128x192xf32> -> vector<128x192xf32>
    %c0_3 = arith.constant 0 : index
    %c0_4 = arith.constant 0 : index
    %3 = vector.load %arg2[%c0_3, %c0_4] : memref<1x192xf32, #tpu.memory_space<vmem>>, vector<1x192xf32>
    %4 = vector.broadcast %3 : vector<1x192xf32> to vector<128x192xf32>
    %5 = arith.addf %2, %4 : vector<128x192xf32>
    %c0_5 = arith.constant 0 : index
    %c0_6 = arith.constant 0 : index
    %6 = vector.load %arg8[%c0_5, %c0_6] : memref<128x192xf32, #tpu.memory_space<vmem>>, vector<128x192xf32>
    tpu.vector_store %arg8[%c0_5, %c0_6], %5 {strides = array<i32>} : memref<128x192xf32, #tpu.memory_space<vmem>>, vector<128x192xf32>,
    %c0_7 = arith.constant 0 : index
    %c0_8 = arith.constant 0 : index
    %7 = vector.load %arg3[%c0_7, %c0_8] : memref<64x128xbf16, #tpu.memory_space<vmem>>, vector<64x128xbf16>
    %c0_9 = arith.constant 0 : index
    %c0_10 = arith.constant 0 : index
    %8 = vector.load %arg4[%c0_9, %c0_10] : memref<64x64xbf16, #tpu.memory_space<vmem>>, vector<64x64xbf16>
    %c0_11 = arith.constant 0 : index
    %c0_12 = arith.constant 0 : index
    %9 = vector.load %arg5[%c0_11, %c0_12] : memref<1x64xf32, #tpu.memory_space<vmem>>, vector<1x64xf32>
    %10 = vector.shape_cast %9 : vector<1x64xf32> to vector<1x64xf32>
    %11 = vector.broadcast %10 : vector<1x64xf32> to vector<16x64xf32>
    %12 = tpu.iota {dimensions = array<i32: 1>} : vector<16x64xi32>
    %c32_i32 = arith.constant 32 : i32
    %13 = vector.broadcast %c32_i32 : i32 to vector<16x64xi32>
    %14 = arith.cmpi slt, %12, %13 : vector<16x64xi32>
    %cst_13 = arith.constant 0.000000e+00 : f32
    %15 = vector.broadcast %cst_13 : f32 to vector<16x64xf32>
    %c0_14 = arith.constant 0 : index
    %c0_15 = arith.constant 0 : index
    %16 = vector.load %arg8[%c0_14, %c0_15] : memref<128x192xf32, #tpu.memory_space<vmem>>, vector<16x192xf32>
    %17 = arith.truncf %15 : vector<16x64xf32> to vector<16x64xbf16>
    %cst_16 = arith.constant dense<0.000000e+00> : vector<16x128xf32>
    %18 = tpu.matmul %17, %7, %cst_16 {dimension_numbers = #tpu.dot_dimension_numbers<[1], [0], [0], [1], [0, 0, 1, 1], [], []>} : vector<16x64xbf16>, vector<64x128xbf16>, vector<16x128xf32> -> vector<16x128xf32>
    %cst_17 = arith.constant dense<0.000000e+00> : vector<16x64xf32>
    %19 = tpu.matmul %17, %8, %cst_17 {dimension_numbers = #tpu.dot_dimension_numbers<[1], [0], [0], [1], [0, 0, 1, 1], [], []>} : vector<16x64xbf16>, vector<64x64xbf16>, vector<16x64xf32> -> vector<16x64xf32>
    %20 = vector.extract_strided_slice %16 {offsets = [0, 0], sizes = [16, 128], strides = [1, 1]} : vector<16x192xf32> to vector<16x128xf32>
    %21 = arith.addf %20, %18 : vector<16x128xf32>
    %22 = arith.negf %21 : vector<16x128xf32>
    %23 = math.exp %22 : vector<16x128xf32>
    %cst_18 = arith.constant 1.000000e+00 : f32
    %24 = vector.broadcast %cst_18 : f32 to vector<16x128xf32>
    %25 = arith.addf %24, %23 : vector<16x128xf32>
    %26 = arith.divf %24, %25 : vector<16x128xf32>
    %27 = vector.extract_strided_slice %26 {offsets = [0, 0], sizes = [16, 64], strides = [1, 1]} : vector<16x128xf32> to vector<16x64xf32>
    %28 = vector.extract_strided_slice %26 {offsets = [0, 64], sizes = [16, 64], strides = [1, 1]} : vector<16x128xf32> to vector<16x64xf32>
    %29 = vector.extract_strided_slice %16 {offsets = [0, 128], sizes = [16, 64], strides = [1, 1]} : vector<16x192xf32> to vector<16x64xf32>
    %30 = arith.addf %19, %11 : vector<16x64xf32>
    %31 = arith.mulf %27, %30 : vector<16x64xf32>
    %32 = arith.addf %29, %31 : vector<16x64xf32>
    %33 = math.tanh %32 : vector<16x64xf32>
    %cst_19 = arith.constant 1.000000e+00 : f32
    %34 = vector.broadcast %cst_19 : f32 to vector<16x64xf32>
    %35 = arith.subf %34, %28 : vector<16x64xf32>
    %36 = arith.mulf %35, %33 : vector<16x64xf32>
    %37 = arith.mulf %28, %15 : vector<16x64xf32>
    %38 = arith.addf %36, %37 : vector<16x64xf32>
    %c16 = arith.constant 16 : index
    %c0_20 = arith.constant 0 : index
    %39 = vector.load %arg8[%c16, %c0_20] : memref<128x192xf32, #tpu.memory_space<vmem>>, vector<16x192xf32>
    %40 = arith.truncf %38 : vector<16x64xf32> to vector<16x64xbf16>
    %cst_21 = arith.constant dense<0.000000e+00> : vector<16x128xf32>
    %41 = tpu.matmul %40, %7, %cst_21 {dimension_numbers = #tpu.dot_dimension_numbers<[1], [0], [0], [1], [0, 0, 1, 1], [], []>} : vector<16x64xbf16>, vector<64x128xbf16>, vector<16x128xf32> -> vector<16x128xf32>
    %cst_22 = arith.constant dense<0.000000e+00> : vector<16x64xf32>
    %42 = tpu.matmul %40, %8, %cst_22 {dimension_numbers = #tpu.dot_dimension_numbers<[1], [0], [0], [1], [0, 0, 1, 1], [], []>} : vector<16x64xbf16>, vector<64x64xbf16>, vector<16x64xf32> -> vector<16x64xf32>
    %43 = vector.extract_strided_slice %39 {offsets = [0, 0], sizes = [16, 128], strides = [1, 1]} : vector<16x192xf32> to vector<16x128xf32>
    %44 = arith.addf %43, %41 : vector<16x128xf32>
    %45 = arith.negf %44 : vector<16x128xf32>
    %46 = math.exp %45 : vector<16x128xf32>
    %cst_23 = arith.constant 1.000000e+00 : f32
    %47 = vector.broadcast %cst_23 : f32 to vector<16x128xf32>
    %48 = arith.addf %47, %46 : vector<16x128xf32>
    %49 = arith.divf %47, %48 : vector<16x128xf32>
    %50 = vector.extract_strided_slice %49 {offsets = [0, 0], sizes = [16, 64], strides = [1, 1]} : vector<16x128xf32> to vector<16x64xf32>
    %51 = vector.extract_strided_slice %49 {offsets = [0, 64], sizes = [16, 64], strides = [1, 1]} : vector<16x128xf32> to vector<16x64xf32>
    %52 = vector.extract_strided_slice %39 {offsets = [0, 128], sizes = [16, 64], strides = [1, 1]} : vector<16x192xf32> to vector<16x64xf32>
    %53 = arith.addf %42, %11 : vector<16x64xf32>
    %54 = arith.mulf %50, %53 : vector<16x64xf32>
    %55 = arith.addf %52, %54 : vector<16x64xf32>
    %56 = math.tanh %55 : vector<16x64xf32>
    %cst_24 = arith.constant 1.000000e+00 : f32
    %57 = vector.broadcast %cst_24 : f32 to vector<16x64xf32>
    %58 = arith.subf %57, %51 : vector<16x64xf32>
    %59 = arith.mulf %58, %56 : vector<16x64xf32>
    %60 = arith.mulf %51, %38 : vector<16x64xf32>
    %61 = arith.addf %59, %60 : vector<16x64xf32>
    %c32 = arith.constant 32 : index
    %c0_25 = arith.constant 0 : index
    %62 = vector.load %arg8[%c32, %c0_25] : memref<128x192xf32, #tpu.memory_space<vmem>>, vector<16x192xf32>
    %63 = arith.truncf %61 : vector<16x64xf32> to vector<16x64xbf16>
    %cst_26 = arith.constant dense<0.000000e+00> : vector<16x128xf32>
    %64 = tpu.matmul %63, %7, %cst_26 {dimension_numbers = #tpu.dot_dimension_numbers<[1], [0], [0], [1], [0, 0, 1, 1], [], []>} : vector<16x64xbf16>, vector<64x128xbf16>, vector<16x128xf32> -> vector<16x128xf32>
    %cst_27 = arith.constant dense<0.000000e+00> : vector<16x64xf32>
    %65 = tpu.matmul %63, %8, %cst_27 {dimension_numbers = #tpu.dot_dimension_numbers<[1], [0], [0], [1], [0, 0, 1, 1], [], []>} : vector<16x64xbf16>, vector<64x64xbf16>, vector<16x64xf32> -> vector<16x64xf32>
    %66 = vector.extract_strided_slice %62 {offsets = [0, 0], sizes = [16, 128], strides = [1, 1]} : vector<16x192xf32> to vector<16x128xf32>
    %67 = arith.addf %66, %64 : vector<16x128xf32>
    %68 = arith.negf %67 : vector<16x128xf32>
    %69 = math.exp %68 : vector<16x128xf32>
    %cst_28 = arith.constant 1.000000e+00 : f32
    %70 = vector.broadcast %cst_28 : f32 to vector<16x128xf32>
    %71 = arith.addf %70, %69 : vector<16x128xf32>
    %72 = arith.divf %70, %71 : vector<16x128xf32>
    %73 = vector.extract_strided_slice %72 {offsets = [0, 0], sizes = [16, 64], strides = [1, 1]} : vector<16x128xf32> to vector<16x64xf32>
    %74 = vector.extract_strided_slice %72 {offsets = [0, 64], sizes = [16, 64], strides = [1, 1]} : vector<16x128xf32> to vector<16x64xf32>
    %75 = vector.extract_strided_slice %62 {offsets = [0, 128], sizes = [16, 64], strides = [1, 1]} : vector<16x192xf32> to vector<16x64xf32>
    %76 = arith.addf %65, %11 : vector<16x64xf32>
    %77 = arith.mulf %73, %76 : vector<16x64xf32>
    %78 = arith.addf %75, %77 : vector<16x64xf32>
    %79 = math.tanh %78 : vector<16x64xf32>
    %cst_29 = arith.constant 1.000000e+00 : f32
    %80 = vector.broadcast %cst_29 : f32 to vector<16x64xf32>
    %81 = arith.subf %80, %74 : vector<16x64xf32>
    %82 = arith.mulf %81, %79 : vector<16x64xf32>
    %83 = arith.mulf %74, %61 : vector<16x64xf32>
    %84 = arith.addf %82, %83 : vector<16x64xf32>
    %c48 = arith.constant 48 : index
    %c0_30 = arith.constant 0 : index
    %85 = vector.load %arg8[%c48, %c0_30] : memref<128x192xf32, #tpu.memory_space<vmem>>, vector<16x192xf32>
    %86 = arith.truncf %84 : vector<16x64xf32> to vector<16x64xbf16>
    %cst_31 = arith.constant dense<0.000000e+00> : vector<16x128xf32>
    %87 = tpu.matmul %86, %7, %cst_31 {dimension_numbers = #tpu.dot_dimension_numbers<[1], [0], [0], [1], [0, 0, 1, 1], [], []>} : vector<16x64xbf16>, vector<64x128xbf16>, vector<16x128xf32> -> vector<16x128xf32>
    %cst_32 = arith.constant dense<0.000000e+00> : vector<16x64xf32>
    %88 = tpu.matmul %86, %8, %cst_32 {dimension_numbers = #tpu.dot_dimension_numbers<[1], [0], [0], [1], [0, 0, 1, 1], [], []>} : vector<16x64xbf16>, vector<64x64xbf16>, vector<16x64xf32> -> vector<16x64xf32>
    %89 = vector.extract_strided_slice %85 {offsets = [0, 0], sizes = [16, 128], strides = [1, 1]} : vector<16x192xf32> to vector<16x128xf32>
    %90 = arith.addf %89, %87 : vector<16x128xf32>
    %91 = arith.negf %90 : vector<16x128xf32>
    %92 = math.exp %91 : vector<16x128xf32>
    %cst_33 = arith.constant 1.000000e+00 : f32
    %93 = vector.broadcast %cst_33 : f32 to vector<16x128xf32>
    %94 = arith.addf %93, %92 : vector<16x128xf32>
    %95 = arith.divf %93, %94 : vector<16x128xf32>
    %96 = vector.extract_strided_slice %95 {offsets = [0, 0], sizes = [16, 64], strides = [1, 1]} : vector<16x128xf32> to vector<16x64xf32>
    %97 = vector.extract_strided_slice %95 {offsets = [0, 64], sizes = [16, 64], strides = [1, 1]} : vector<16x128xf32> to vector<16x64xf32>
    %98 = vector.extract_strided_slice %85 {offsets = [0, 128], sizes = [16, 64], strides = [1, 1]} : vector<16x192xf32> to vector<16x64xf32>
    %99 = arith.addf %88, %11 : vector<16x64xf32>
    %100 = arith.mulf %96, %99 : vector<16x64xf32>
    %101 = arith.addf %98, %100 : vector<16x64xf32>
    %102 = math.tanh %101 : vector<16x64xf32>
    %cst_34 = arith.constant 1.000000e+00 : f32
    %103 = vector.broadcast %cst_34 : f32 to vector<16x64xf32>
    %104 = arith.subf %103, %97 : vector<16x64xf32>
    %105 = arith.mulf %104, %102 : vector<16x64xf32>
    %106 = arith.mulf %97, %84 : vector<16x64xf32>
    %107 = arith.addf %105, %106 : vector<16x64xf32>
    %c64 = arith.constant 64 : index
    %c0_35 = arith.constant 0 : index
    %108 = vector.load %arg8[%c64, %c0_35] : memref<128x192xf32, #tpu.memory_space<vmem>>, vector<16x192xf32>
    %109 = arith.truncf %107 : vector<16x64xf32> to vector<16x64xbf16>
    %cst_36 = arith.constant dense<0.000000e+00> : vector<16x128xf32>
    %110 = tpu.matmul %109, %7, %cst_36 {dimension_numbers = #tpu.dot_dimension_numbers<[1], [0], [0], [1], [0, 0, 1, 1], [], []>} : vector<16x64xbf16>, vector<64x128xbf16>, vector<16x128xf32> -> vector<16x128xf32>
    %cst_37 = arith.constant dense<0.000000e+00> : vector<16x64xf32>
    %111 = tpu.matmul %109, %8, %cst_37 {dimension_numbers = #tpu.dot_dimension_numbers<[1], [0], [0], [1], [0, 0, 1, 1], [], []>} : vector<16x64xbf16>, vector<64x64xbf16>, vector<16x64xf32> -> vector<16x64xf32>
    %112 = vector.extract_strided_slice %108 {offsets = [0, 0], sizes = [16, 128], strides = [1, 1]} : vector<16x192xf32> to vector<16x128xf32>
    %113 = arith.addf %112, %110 : vector<16x128xf32>
    %114 = arith.negf %113 : vector<16x128xf32>
    %115 = math.exp %114 : vector<16x128xf32>
    %cst_38 = arith.constant 1.000000e+00 : f32
    %116 = vector.broadcast %cst_38 : f32 to vector<16x128xf32>
    %117 = arith.addf %116, %115 : vector<16x128xf32>
    %118 = arith.divf %116, %117 : vector<16x128xf32>
    %119 = vector.extract_strided_slice %118 {offsets = [0, 0], sizes = [16, 64], strides = [1, 1]} : vector<16x128xf32> to vector<16x64xf32>
    %120 = vector.extract_strided_slice %118 {offsets = [0, 64], sizes = [16, 64], strides = [1, 1]} : vector<16x128xf32> to vector<16x64xf32>
    %121 = vector.extract_strided_slice %108 {offsets = [0, 128], sizes = [16, 64], strides = [1, 1]} : vector<16x192xf32> to vector<16x64xf32>
    %122 = arith.addf %111, %11 : vector<16x64xf32>
    %123 = arith.mulf %119, %122 : vector<16x64xf32>
    %124 = arith.addf %121, %123 : vector<16x64xf32>
    %125 = math.tanh %124 : vector<16x64xf32>
    %cst_39 = arith.constant 1.000000e+00 : f32
    %126 = vector.broadcast %cst_39 : f32 to vector<16x64xf32>
    %127 = arith.subf %126, %120 : vector<16x64xf32>
    %128 = arith.mulf %127, %125 : vector<16x64xf32>
    %129 = arith.mulf %120, %107 : vector<16x64xf32>
    %130 = arith.addf %128, %129 : vector<16x64xf32>
    %c80 = arith.constant 80 : index
    %c0_40 = arith.constant 0 : index
    %131 = vector.load %arg8[%c80, %c0_40] : memref<128x192xf32, #tpu.memory_space<vmem>>, vector<16x192xf32>
    %132 = arith.truncf %130 : vector<16x64xf32> to vector<16x64xbf16>
    %cst_41 = arith.constant dense<0.000000e+00> : vector<16x128xf32>
    %133 = tpu.matmul %132, %7, %cst_41 {dimension_numbers = #tpu.dot_dimension_numbers<[1], [0], [0], [1], [0, 0, 1, 1], [], []>} : vector<16x64xbf16>, vector<64x128xbf16>, vector<16x128xf32> -> vector<16x128xf32>
    %cst_42 = arith.constant dense<0.000000e+00> : vector<16x64xf32>
    %134 = tpu.matmul %132, %8, %cst_42 {dimension_numbers = #tpu.dot_dimension_numbers<[1], [0], [0], [1], [0, 0, 1, 1], [], []>} : vector<16x64xbf16>, vector<64x64xbf16>, vector<16x64xf32> -> vector<16x64xf32>
    %135 = vector.extract_strided_slice %131 {offsets = [0, 0], sizes = [16, 128], strides = [1, 1]} : vector<16x192xf32> to vector<16x128xf32>
    %136 = arith.addf %135, %133 : vector<16x128xf32>
    %137 = arith.negf %136 : vector<16x128xf32>
    %138 = math.exp %137 : vector<16x128xf32>
    %cst_43 = arith.constant 1.000000e+00 : f32
    %139 = vector.broadcast %cst_43 : f32 to vector<16x128xf32>
    %140 = arith.addf %139, %138 : vector<16x128xf32>
    %141 = arith.divf %139, %140 : vector<16x128xf32>
    %142 = vector.extract_strided_slice %141 {offsets = [0, 0], sizes = [16, 64], strides = [1, 1]} : vector<16x128xf32> to vector<16x64xf32>
    %143 = vector.extract_strided_slice %141 {offsets = [0, 64], sizes = [16, 64], strides = [1, 1]} : vector<16x128xf32> to vector<16x64xf32>
    %144 = vector.extract_strided_slice %131 {offsets = [0, 128], sizes = [16, 64], strides = [1, 1]} : vector<16x192xf32> to vector<16x64xf32>
    %145 = arith.addf %134, %11 : vector<16x64xf32>
    %146 = arith.mulf %142, %145 : vector<16x64xf32>
    %147 = arith.addf %144, %146 : vector<16x64xf32>
    %148 = math.tanh %147 : vector<16x64xf32>
    %cst_44 = arith.constant 1.000000e+00 : f32
    %149 = vector.broadcast %cst_44 : f32 to vector<16x64xf32>
    %150 = arith.subf %149, %143 : vector<16x64xf32>
    %151 = arith.mulf %150, %148 : vector<16x64xf32>
    %152 = arith.mulf %143, %130 : vector<16x64xf32>
    %153 = arith.addf %151, %152 : vector<16x64xf32>
    %c96 = arith.constant 96 : index
    %c0_45 = arith.constant 0 : index
    %154 = vector.load %arg8[%c96, %c0_45] : memref<128x192xf32, #tpu.memory_space<vmem>>, vector<16x192xf32>
    %155 = arith.truncf %153 : vector<16x64xf32> to vector<16x64xbf16>
    %cst_46 = arith.constant dense<0.000000e+00> : vector<16x128xf32>
    %156 = tpu.matmul %155, %7, %cst_46 {dimension_numbers = #tpu.dot_dimension_numbers<[1], [0], [0], [1], [0, 0, 1, 1], [], []>} : vector<16x64xbf16>, vector<64x128xbf16>, vector<16x128xf32> -> vector<16x128xf32>
    %cst_47 = arith.constant dense<0.000000e+00> : vector<16x64xf32>
    %157 = tpu.matmul %155, %8, %cst_47 {dimension_numbers = #tpu.dot_dimension_numbers<[1], [0], [0], [1], [0, 0, 1, 1], [], []>} : vector<16x64xbf16>, vector<64x64xbf16>, vector<16x64xf32> -> vector<16x64xf32>
    %158 = vector.extract_strided_slice %154 {offsets = [0, 0], sizes = [16, 128], strides = [1, 1]} : vector<16x192xf32> to vector<16x128xf32>
    %159 = arith.addf %158, %156 : vector<16x128xf32>
    %160 = arith.negf %159 : vector<16x128xf32>
    %161 = math.exp %160 : vector<16x128xf32>
    %cst_48 = arith.constant 1.000000e+00 : f32
    %162 = vector.broadcast %cst_48 : f32 to vector<16x128xf32>
    %163 = arith.addf %162, %161 : vector<16x128xf32>
    %164 = arith.divf %162, %163 : vector<16x128xf32>
    %165 = vector.extract_strided_slice %164 {offsets = [0, 0], sizes = [16, 64], strides = [1, 1]} : vector<16x128xf32> to vector<16x64xf32>
    %166 = vector.extract_strided_slice %164 {offsets = [0, 64], sizes = [16, 64], strides = [1, 1]} : vector<16x128xf32> to vector<16x64xf32>
    %167 = vector.extract_strided_slice %154 {offsets = [0, 128], sizes = [16, 64], strides = [1, 1]} : vector<16x192xf32> to vector<16x64xf32>
    %168 = arith.addf %157, %11 : vector<16x64xf32>
    %169 = arith.mulf %165, %168 : vector<16x64xf32>
    %170 = arith.addf %167, %169 : vector<16x64xf32>
    %171 = math.tanh %170 : vector<16x64xf32>
    %cst_49 = arith.constant 1.000000e+00 : f32
    %172 = vector.broadcast %cst_49 : f32 to vector<16x64xf32>
    %173 = arith.subf %172, %166 : vector<16x64xf32>
    %174 = arith.mulf %173, %171 : vector<16x64xf32>
    %175 = arith.mulf %166, %153 : vector<16x64xf32>
    %176 = arith.addf %174, %175 : vector<16x64xf32>
    %c112 = arith.constant 112 : index
    %c0_50 = arith.constant 0 : index
    %177 = vector.load %arg8[%c112, %c0_50] : memref<128x192xf32, #tpu.memory_space<vmem>>, vector<16x192xf32>
    %178 = arith.truncf %176 : vector<16x64xf32> to vector<16x64xbf16>
    %cst_51 = arith.constant dense<0.000000e+00> : vector<16x128xf32>
    %179 = tpu.matmul %178, %7, %cst_51 {dimension_numbers = #tpu.dot_dimension_numbers<[1], [0], [0], [1], [0, 0, 1, 1], [], []>} : vector<16x64xbf16>, vector<64x128xbf16>, vector<16x128xf32> -> vector<16x128xf32>
    %cst_52 = arith.constant dense<0.000000e+00> : vector<16x64xf32>
    %180 = tpu.matmul %178, %8, %cst_52 {dimension_numbers = #tpu.dot_dimension_numbers<[1], [0], [0], [1], [0, 0, 1, 1], [], []>} : vector<16x64xbf16>, vector<64x64xbf16>, vector<16x64xf32> -> vector<16x64xf32>
    %181 = vector.extract_strided_slice %177 {offsets = [0, 0], sizes = [16, 128], strides = [1, 1]} : vector<16x192xf32> to vector<16x128xf32>
    %182 = arith.addf %181, %179 : vector<16x128xf32>
    %183 = arith.negf %182 : vector<16x128xf32>
    %184 = math.exp %183 : vector<16x128xf32>
    %cst_53 = arith.constant 1.000000e+00 : f32
    %185 = vector.broadcast %cst_53 : f32 to vector<16x128xf32>
    %186 = arith.addf %185, %184 : vector<16x128xf32>
    %187 = arith.divf %185, %186 : vector<16x128xf32>
    %188 = vector.extract_strided_slice %187 {offsets = [0, 0], sizes = [16, 64], strides = [1, 1]} : vector<16x128xf32> to vector<16x64xf32>
    %189 = vector.extract_strided_slice %187 {offsets = [0, 64], sizes = [16, 64], strides = [1, 1]} : vector<16x128xf32> to vector<16x64xf32>
    %190 = vector.extract_strided_slice %177 {offsets = [0, 128], sizes = [16, 64], strides = [1, 1]} : vector<16x192xf32> to vector<16x64xf32>
    %191 = arith.addf %180, %11 : vector<16x64xf32>
    %192 = arith.mulf %188, %191 : vector<16x64xf32>
    %193 = arith.addf %190, %192 : vector<16x64xf32>
    %194 = math.tanh %193 : vector<16x64xf32>
    %cst_54 = arith.constant 1.000000e+00 : f32
    %195 = vector.broadcast %cst_54 : f32 to vector<16x64xf32>
    %196 = arith.subf %195, %189 : vector<16x64xf32>
    %197 = arith.mulf %196, %194 : vector<16x64xf32>
    %198 = arith.mulf %189, %176 : vector<16x64xf32>
    %199 = arith.addf %197, %198 : vector<16x64xf32>
    %200 = arith.select %14, %38, %199 : vector<16x64xi1>, vector<16x64xf32>
    %c0_55 = arith.constant 0 : index
    %c0_56 = arith.constant 0 : index
    %c0_57 = arith.constant 0 : index
    %201 = vector.load %arg6[%c0_55, %c0_56, %c0_57] : memref<8x16x64xf32, #tpu.memory_space<vmem>>, vector<1x16x64xf32>
    %202 = vector.shape_cast %201 : vector<1x16x64xf32> to vector<16x64xf32>
    %203 = vector.shape_cast %200 : vector<16x64xf32> to vector<1x16x64xf32>
    tpu.vector_store %arg6[%c0_55, %c0_56, %c0_57], %203 {strides = array<i32>} : memref<8x16x64xf32, #tpu.memory_space<vmem>>, vector<1x16x64xf32>,
    %204 = arith.select %14, %61, %176 : vector<16x64xi1>, vector<16x64xf32>
    %c1 = arith.constant 1 : index
    %c0_58 = arith.constant 0 : index
    %c0_59 = arith.constant 0 : index
    %205 = vector.load %arg6[%c1, %c0_58, %c0_59] : memref<8x16x64xf32, #tpu.memory_space<vmem>>, vector<1x16x64xf32>
    %206 = vector.shape_cast %205 : vector<1x16x64xf32> to vector<16x64xf32>
    %207 = vector.shape_cast %204 : vector<16x64xf32> to vector<1x16x64xf32>
    tpu.vector_store %arg6[%c1, %c0_58, %c0_59], %207 {strides = array<i32>} : memref<8x16x64xf32, #tpu.memory_space<vmem>>, vector<1x16x64xf32>,
    %208 = arith.select %14, %84, %153 : vector<16x64xi1>, vector<16x64xf32>
    %c2 = arith.constant 2 : index
    %c0_60 = arith.constant 0 : index
    %c0_61 = arith.constant 0 : index
    %209 = vector.load %arg6[%c2, %c0_60, %c0_61] : memref<8x16x64xf32, #tpu.memory_space<vmem>>, vector<1x16x64xf32>
    %210 = vector.shape_cast %209 : vector<1x16x64xf32> to vector<16x64xf32>
    %211 = vector.shape_cast %208 : vector<16x64xf32> to vector<1x16x64xf32>
    tpu.vector_store %arg6[%c2, %c0_60, %c0_61], %211 {strides = array<i32>} : memref<8x16x64xf32, #tpu.memory_space<vmem>>, vector<1x16x64xf32>,
    %212 = arith.select %14, %107, %130 : vector<16x64xi1>, vector<16x64xf32>
    %c3 = arith.constant 3 : index
    %c0_62 = arith.constant 0 : index
    %c0_63 = arith.constant 0 : index
    %213 = vector.load %arg6[%c3, %c0_62, %c0_63] : memref<8x16x64xf32, #tpu.memory_space<vmem>>, vector<1x16x64xf32>
    %214 = vector.shape_cast %213 : vector<1x16x64xf32> to vector<16x64xf32>
    %215 = vector.shape_cast %212 : vector<16x64xf32> to vector<1x16x64xf32>
    tpu.vector_store %arg6[%c3, %c0_62, %c0_63], %215 {strides = array<i32>} : memref<8x16x64xf32, #tpu.memory_space<vmem>>, vector<1x16x64xf32>,
    %216 = arith.select %14, %130, %107 : vector<16x64xi1>, vector<16x64xf32>
    %c4 = arith.constant 4 : index
    %c0_64 = arith.constant 0 : index
    %c0_65 = arith.constant 0 : index
    %217 = vector.load %arg6[%c4, %c0_64, %c0_65] : memref<8x16x64xf32, #tpu.memory_space<vmem>>, vector<1x16x64xf32>
    %218 = vector.shape_cast %217 : vector<1x16x64xf32> to vector<16x64xf32>
    %219 = vector.shape_cast %216 : vector<16x64xf32> to vector<1x16x64xf32>
    tpu.vector_store %arg6[%c4, %c0_64, %c0_65], %219 {strides = array<i32>} : memref<8x16x64xf32, #tpu.memory_space<vmem>>, vector<1x16x64xf32>,
    %220 = arith.select %14, %153, %84 : vector<16x64xi1>, vector<16x64xf32>
    %c5 = arith.constant 5 : index
    %c0_66 = arith.constant 0 : index
    %c0_67 = arith.constant 0 : index
    %221 = vector.load %arg6[%c5, %c0_66, %c0_67] : memref<8x16x64xf32, #tpu.memory_space<vmem>>, vector<1x16x64xf32>
    %222 = vector.shape_cast %221 : vector<1x16x64xf32> to vector<16x64xf32>
    %223 = vector.shape_cast %220 : vector<16x64xf32> to vector<1x16x64xf32>
    tpu.vector_store %arg6[%c5, %c0_66, %c0_67], %223 {strides = array<i32>} : memref<8x16x64xf32, #tpu.memory_space<vmem>>, vector<1x16x64xf32>,
    %224 = arith.select %14, %176, %61 : vector<16x64xi1>, vector<16x64xf32>
    %c6 = arith.constant 6 : index
    %c0_68 = arith.constant 0 : index
    %c0_69 = arith.constant 0 : index
    %225 = vector.load %arg6[%c6, %c0_68, %c0_69] : memref<8x16x64xf32, #tpu.memory_space<vmem>>, vector<1x16x64xf32>
    %226 = vector.shape_cast %225 : vector<1x16x64xf32> to vector<16x64xf32>
    %227 = vector.shape_cast %224 : vector<16x64xf32> to vector<1x16x64xf32>
    tpu.vector_store %arg6[%c6, %c0_68, %c0_69], %227 {strides = array<i32>} : memref<8x16x64xf32, #tpu.memory_space<vmem>>, vector<1x16x64xf32>,
    %228 = arith.select %14, %199, %38 : vector<16x64xi1>, vector<16x64xf32>
    %c7 = arith.constant 7 : index
    %c0_70 = arith.constant 0 : index
    %c0_71 = arith.constant 0 : index
    %229 = vector.load %arg6[%c7, %c0_70, %c0_71] : memref<8x16x64xf32, #tpu.memory_space<vmem>>, vector<1x16x64xf32>
    %230 = vector.shape_cast %229 : vector<1x16x64xf32> to vector<16x64xf32>
    %231 = vector.shape_cast %228 : vector<16x64xf32> to vector<1x16x64xf32>
    tpu.vector_store %arg6[%c7, %c0_70, %c0_71], %231 {strides = array<i32>} : memref<8x16x64xf32, #tpu.memory_space<vmem>>, vector<1x16x64xf32>,
    %c0_72 = arith.constant 0 : index
    %c0_73 = arith.constant 0 : index
    %232 = vector.load %arg7[%c0_72, %c0_73] : memref<16x64xf32, #tpu.memory_space<vmem>>, vector<16x64xf32>
    tpu.vector_store %arg7[%c0_72, %c0_73], %199 {strides = array<i32>} : memref<16x64xf32, #tpu.memory_space<vmem>>, vector<16x64xf32>,
    return
  }
}

</mosaic_0001>

<llo_original>
// kernel: couplets_encode_forward.1
$region0: #{couplets_encode_forward.1}
  #allocation0 [shape = 'u32[]', space=smem, size = 0x4, offset = 0x4, fixed_abs, tag = 'smem constant byte address 0x4 - core index']
  #allocation1 [shape = 'u32[144,128]{1,0:T(1,128)}', space=vmem, size = 0x12000, scoped, tag = 'internal scratch']
  #allocation2 [shape = 'f32[128,192]{1,0:T(8,128)}', space=vmem, size = 0x20000, scoped, tag = 'scratch operand']
  %s0 = inlined_call_operand.vmem [shape: bf16[128,64], index: 0, kind: input, shape index: {}]
  %s1 = inlined_call_operand.vmem [shape: bf16[64,192], index: 1, kind: input, shape index: {}]
  %s2 = inlined_call_operand.vmem [shape: f32[1,192], index: 2, kind: input, shape index: {}]
  %s3 = inlined_call_operand.vmem [shape: bf16[64,128], index: 3, kind: input, shape index: {}]
  %s4 = inlined_call_operand.vmem [shape: bf16[64,64], index: 4, kind: input, shape index: {}]
  %s5 = inlined_call_operand.vmem [shape: f32[1,64], index: 5, kind: input, shape index: {}]
  %s6 = inlined_call_operand.vmem [shape: f32[8,16,64], index: 6, kind: output, shape index: {0}]
  %s7 = inlined_call_operand.vmem [shape: f32[16,64], index: 7, kind: output, shape index: {1}]
  %8 = xla_tuple %s6, %s7
  %s9 = sld [smem:[#allocation0]]
  $region42: #{couplets_encode_forward.1} parent=0
    _
  %s11 = ssub.s32 1, %s9
  %s12 = scalar_select 0, %s11, %s9
  // Predicated region
  $region2: #{couplets_encode_forward.1} parent=0 // pred_check
    _
  $region3: #{couplets_encode_forward.1} parent=0 // pred_check_branch
    %14 = sbr.rel (0) target = $region5
  $region4: #{couplets_encode_forward.1} parent=0 // pred_region
    _
  $region5: #{couplets_encode_forward.1} parent=0 // pred_fallthru
    _
  // Predicated region
  $region6: #{couplets_encode_forward.1} parent=0 // pred_check
    _
  $region7: #{couplets_encode_forward.1} parent=0 // pred_check_branch
    %16 = sbr.rel (0) target = $region9
  $region8: #{couplets_encode_forward.1} parent=0 // pred_region
    _
  $region9: #{couplets_encode_forward.1} parent=0 // pred_fallthru
    _
  // Predicated region
  $region10: #{couplets_encode_forward.1} parent=0 // pred_check
    _
  $region11: #{couplets_encode_forward.1} parent=0 // pred_check_branch
    %18 = sbr.rel (0) target = $region13
  $region12: #{couplets_encode_forward.1} parent=0 // pred_region
    _
  $region13: #{couplets_encode_forward.1} parent=0 // pred_fallthru
    _
  // Predicated region
  $region14: #{couplets_encode_forward.1} parent=0 // pred_check
    _
  $region15: #{couplets_encode_forward.1} parent=0 // pred_check_branch
    %20 = sbr.rel (0) target = $region17
  $region16: #{couplets_encode_forward.1} parent=0 // pred_region
    _
  $region17: #{couplets_encode_forward.1} parent=0 // pred_fallthru
    _
  // Predicated region
  $region18: #{couplets_encode_forward.1} parent=0 // pred_check
    _
  $region19: #{couplets_encode_forward.1} parent=0 // pred_check_branch
    %22 = sbr.rel (0) target = $region21
  $region20: #{couplets_encode_forward.1} parent=0 // pred_region
    _
  $region21: #{couplets_encode_forward.1} parent=0 // pred_fallthru
    _
  // Predicated region
  $region22: #{couplets_encode_forward.1} parent=0 // pred_check
    _
  $region23: #{couplets_encode_forward.1} parent=0 // pred_check_branch
    %24 = sbr.rel (0) target = $region25
  $region24: #{couplets_encode_forward.1} parent=0 // pred_region
    _
  $region25: #{couplets_encode_forward.1} parent=0 // pred_fallthru
    _
  %v26 = vld [vmem:[%s0] sm:$0xf]
  %v27 = vld [vmem:[%s0 + $0x4] sm:$0xf]
  %v28 = vld [vmem:[%s0 + $0x8] sm:$0xf]
  %v29 = vld [vmem:[%s0 + $0xc] sm:$0xf]
  %v30 = vld [vmem:[%s0 + $0x10] sm:$0xf]
  %v31 = vld [vmem:[%s0 + $0x14] sm:$0xf]
  %v32 = vld [vmem:[%s0 + $0x18] sm:$0xf]
  %v33 = vld [vmem:[%s0 + $0x1c] sm:$0xf]
  %v34 = vld [vmem:[%s0 + $0x20] sm:$0xf]
  %v35 = vld [vmem:[%s0 + $0x24] sm:$0xf]
  %v36 = vld [vmem:[%s0 + $0x28] sm:$0xf]
  %v37 = vld [vmem:[%s0 + $0x2c] sm:$0xf]
  %v38 = vld [vmem:[%s0 + $0x30] sm:$0xf]
  %v39 = vld [vmem:[%s0 + $0x34] sm:$0xf]
  %v40 = vld [vmem:[%s0 + $0x38] sm:$0xf]
  %v41 = vld [vmem:[%s0 + $0x3c] sm:$0xf]
  %v42 = vld [vmem:[%s1] sm:$0xff]
  %v43 = vld [vmem:[%s1 + $0x8] sm:$0xff]
  %v44 = vld [vmem:[%s1 + $0x10] sm:$0xff]
  %v45 = vld [vmem:[%s1 + $0x18] sm:$0xff]
  %v46 = vld [vmem:[%s1 + $0x20] sm:$0xff]
  %v47 = vld [vmem:[%s1 + $0x28] sm:$0xff]
  %v48 = vld [vmem:[%s1 + $0x30] sm:$0xff]
  %v49 = vld [vmem:[%s1 + $0x38] sm:$0xff]
  %v50 = vld [vmem:[%s2] sm:$0x3]
  %v52 = vlaneseq
  %v53 = vshrl.u32 %v52, 7
  %v54 = vsub.s32 0, %v53
  %v55 = vrot.slane %v50, %v54
  %v56 = vlaneseq
  %v57 = vshrl.u32 %v56, 7
  %v58 = vsub.s32 1, %v57
  %v59 = vrot.slane %v50, %v58
  %v78 = vunpack.c.l.b16 %v26
  %v79 = vunpack.c.l.b16 %v27
  %v80 = vunpack.c.l.b16 %v28
  %v81 = vunpack.c.l.b16 %v29
  %v82 = vunpack.c.l.b16 %v30
  %v83 = vunpack.c.l.b16 %v31
  %v84 = vunpack.c.l.b16 %v32
  %v85 = vunpack.c.l.b16 %v33
  %v86 = vunpack.c.l.b16 %v34
  %v87 = vunpack.c.l.b16 %v35
  %v88 = vunpack.c.l.b16 %v36
  %v89 = vunpack.c.l.b16 %v37
  %v90 = vunpack.c.l.b16 %v38
  %v91 = vunpack.c.l.b16 %v39
  %v92 = vunpack.c.l.b16 %v40
  %v93 = vunpack.c.l.b16 %v41
  %v94 = vpack.c.b16 %v79, %v78
  %v95 = vpack.c.b16 %v81, %v80
  %v96 = vpack.c.b16 %v83, %v82
  %v97 = vpack.c.b16 %v85, %v84
  %v98 = vpack.c.b16 %v87, %v86
  %v99 = vpack.c.b16 %v89, %v88
  %v100 = vpack.c.b16 %v91, %v90
  %v101 = vpack.c.b16 %v93, %v92
  %v110 = vunpack.c.l.b16 %v42
  %v111 = vunpack.c.h.b16 %v42
  %v112 = vunpack.c.l.b16 %v43
  %v113 = vunpack.c.h.b16 %v43
  %v114 = vunpack.c.l.b16 %v44
  %v115 = vunpack.c.h.b16 %v44
  %v116 = vunpack.c.l.b16 %v45
  %v117 = vunpack.c.h.b16 %v45
  %v118 = vunpack.c.l.b16 %v46
  %v119 = vunpack.c.h.b16 %v46
  %v120 = vunpack.c.l.b16 %v47
  %v121 = vunpack.c.h.b16 %v47
  %v122 = vunpack.c.l.b16 %v48
  %v123 = vunpack.c.h.b16 %v48
  %v124 = vunpack.c.l.b16 %v49
  %v125 = vunpack.c.h.b16 %v49
  %v126 = vpack.c.b16 %v112, %v110
  %v127 = vpack.c.b16 %v113, %v111
  %v128 = vpack.c.b16 %v116, %v114
  %v129 = vpack.c.b16 %v117, %v115
  %v130 = vpack.c.b16 %v120, %v118
  %v131 = vpack.c.b16 %v121, %v119
  %v132 = vpack.c.b16 %v124, %v122
  %v133 = vpack.c.b16 %v125, %v123
  %vm142 = vcmask 523264
  %v144 = vsel %vm142, %v94, 0
  %v147 = vsel %vm142, %v95, 0
  %v150 = vsel %vm142, %v96, 0
  %v153 = vsel %vm142, %v97, 0
  %v156 = vsel %vm142, %v98, 0
  %v159 = vsel %vm142, %v99, 0
  %v162 = vsel %vm142, %v100, 0
  %v165 = vsel %vm142, %v101, 0
  %167 = vmatprep.subr.bf16.mxu0 %v127
  %168 = vmatpush1.bf16.msra.mxu0 %v126
  %169 = vmatprep.subr.bf16.mxu0 %v129
  %170 = vmatpush1.bf16.msra.mxu0 %v128
  %171 = vmatprep.subr.bf16.mxu0 %v131
  %172 = vmatpush1.bf16.msra.mxu0 %v130
  %173 = vmatprep.subr.bf16.mxu0 %v133
  %174 = vmatpush1.bf16.msra.mxu0 %v132
  %175 = vmatprep.subr.bf16.mxu0 0
  %176 = vmatpush1.bf16.msra.mxu0 0
  %177 = vmatprep.subr.bf16.mxu0 0
  %178 = vmatpush1.bf16.msra.mxu0 0
  %179 = vmatprep.subr.bf16.mxu0 0
  %180 = vmatpush1.bf16.msra.mxu0 0
  %181 = vmatprep.subr.bf16.mxu0 0
  %182 = vmatpush1.bf16.msra.mxu0 0
  %183 = vmatprep.subr.bf16.mxu0 0
  %184 = vmatpush1.bf16.msra.mxu0 0
  %185 = vmatprep.subr.bf16.mxu0 0
  %186 = vmatpush1.bf16.msra.mxu0 0
  %187 = vmatprep.subr.bf16.mxu0 0
  %188 = vmatpush1.bf16.msra.mxu0 0
  %189 = vmatprep.subr.bf16.mxu0 0
  %190 = vmatpush1.bf16.msra.mxu0 0
  %191 = vmatprep.subr.bf16.mxu0 0
  %192 = vmatpush1.bf16.msra.mxu0 0
  %193 = vmatprep.subr.bf16.mxu0 0
  %194 = vmatpush1.bf16.msra.mxu0 0
  %195 = vmatprep.subr.bf16.mxu0 0
  %196 = vmatpush1.bf16.msra.mxu0 0
  %197 = vmatprep.subr.bf16.mxu0 0
  %198 = vmatpush1.bf16.msra.mxu0 0
  %199 = vmatprep.mubr.bf16.mxu0 0
  %200 = vmatmul.mubr.bf16.gmra.mrb[0].mxu0 %v144
  %v201 = vpop.f32.mrb[0].mxu0
  %v202 = vadd.f32 %v55, %v201
  %v203 = vpop.f32.mrb[0].mxu0
  %v204 = vadd.f32 %v59, %v203
  %v205 = vpop.f32.mrb[0].mxu0
  %v206 = vadd.f32 %v55, %v205
  %v207 = vpop.f32.mrb[0].mxu0
  %v208 = vadd.f32 %v59, %v207
  %209 = vmatprep.mubr.bf16.mxu0 0
  %210 = vmatmul.mubr.bf16.gmra.mrb[0].mxu0 %v147
  %v211 = vpop.f32.mrb[0].mxu0
  %v212 = vadd.f32 %v55, %v211
  %v213 = vpop.f32.mrb[0].mxu0
  %v214 = vadd.f32 %v59, %v213
  %v215 = vpop.f32.mrb[0].mxu0
  %v216 = vadd.f32 %v55, %v215
  %v217 = vpop.f32.mrb[0].mxu0
  %v218 = vadd.f32 %v59, %v217
  %219 = vmatprep.mubr.bf16.mxu0 0
  %220 = vmatmul.mubr.bf16.gmra.mrb[0].mxu0 %v150
  %v221 = vpop.f32.mrb[0].mxu0
  %v222 = vadd.f32 %v55, %v221
  %v223 = vpop.f32.mrb[0].mxu0
  %v224 = vadd.f32 %v59, %v223
  %v225 = vpop.f32.mrb[0].mxu0
  %v226 = vadd.f32 %v55, %v225
  %v227 = vpop.f32.mrb[0].mxu0
  %v228 = vadd.f32 %v59, %v227
  %229 = vmatprep.mubr.bf16.mxu0 0
  %230 = vmatmul.mubr.bf16.gmra.mrb[0].mxu0 %v153
  %v231 = vpop.f32.mrb[0].mxu0
  %v232 = vadd.f32 %v55, %v231
  %v233 = vpop.f32.mrb[0].mxu0
  %v234 = vadd.f32 %v59, %v233
  %v235 = vpop.f32.mrb[0].mxu0
  %v236 = vadd.f32 %v55, %v235
  %v237 = vpop.f32.mrb[0].mxu0
  %v238 = vadd.f32 %v59, %v237
  %239 = vmatprep.mubr.bf16.mxu0 0
  %240 = vmatmul.mubr.bf16.gmra.mrb[0].mxu0 %v156
  %v241 = vpop.f32.mrb[0].mxu0
  %v242 = vadd.f32 %v55, %v241
  %v243 = vpop.f32.mrb[0].mxu0
  %v244 = vadd.f32 %v59, %v243
  %v245 = vpop.f32.mrb[0].mxu0
  %v246 = vadd.f32 %v55, %v245
  %v247 = vpop.f32.mrb[0].mxu0
  %v248 = vadd.f32 %v59, %v247
  %249 = vmatprep.mubr.bf16.mxu0 0
  %250 = vmatmul.mubr.bf16.gmra.mrb[0].mxu0 %v159
  %v251 = vpop.f32.mrb[0].mxu0
  %v252 = vadd.f32 %v55, %v251
  %v253 = vpop.f32.mrb[0].mxu0
  %v254 = vadd.f32 %v59, %v253
  %v255 = vpop.f32.mrb[0].mxu0
  %v256 = vadd.f32 %v55, %v255
  %v257 = vpop.f32.mrb[0].mxu0
  %v258 = vadd.f32 %v59, %v257
  %259 = vmatprep.mubr.bf16.mxu0 0
  %260 = vmatmul.mubr.bf16.gmra.mrb[0].mxu0 %v162
  %v261 = vpop.f32.mrb[0].mxu0
  %v262 = vadd.f32 %v55, %v261
  %v263 = vpop.f32.mrb[0].mxu0
  %v264 = vadd.f32 %v59, %v263
  %v265 = vpop.f32.mrb[0].mxu0
  %v266 = vadd.f32 %v55, %v265
  %v267 = vpop.f32.mrb[0].mxu0
  %v268 = vadd.f32 %v59, %v267
  %269 = vmatprep.mubr.bf16.mxu0 0
  %270 = vmatmul.mubr.bf16.gmra.mrb[0].mxu0 %v165
  %v271 = vpop.f32.mrb[0].mxu0
  %v272 = vadd.f32 %v55, %v271
  %v273 = vpop.f32.mrb[0].mxu0
  %v274 = vadd.f32 %v59, %v273
  %v275 = vpop.f32.mrb[0].mxu0
  %v276 = vadd.f32 %v55, %v275
  %v277 = vpop.f32.mrb[0].mxu0
  %v278 = vadd.f32 %v59, %v277
  %279 = vdwg.mxu0
  %280 = vst [vmem:[#allocation2] sm:$0xff] %v202
  %281 = vst.msk [vmem:[#allocation2 + $0x8] sm:$0xff] %vm142, %v204
  %282 = vst [vmem:[#allocation2 + $0x10] sm:$0xff] %v206
  %283 = vst.msk [vmem:[#allocation2 + $0x18] sm:$0xff] %vm142, %v208
  %284 = vst [vmem:[#allocation2 + $0x20] sm:$0xff] %v212
  %285 = vst.msk [vmem:[#allocation2 + $0x28] sm:$0xff] %vm142, %v214
  %286 = vst [vmem:[#allocation2 + $0x30] sm:$0xff] %v216
  %287 = vst.msk [vmem:[#allocation2 + $0x38] sm:$0xff] %vm142, %v218
  %288 = vst [vmem:[#allocation2 + $0x40] sm:$0xff] %v222
  %289 = vst.msk [vmem:[#allocation2 + $0x48] sm:$0xff] %vm142, %v224
  %290 = vst [vmem:[#allocation2 + $0x50] sm:$0xff] %v226
  %291 = vst.msk [vmem:[#allocation2 + $0x58] sm:$0xff] %vm142, %v228
  %292 = vst [vmem:[#allocation2 + $0x60] sm:$0xff] %v232
  %293 = vst.msk [vmem:[#allocation2 + $0x68] sm:$0xff] %vm142, %v234
  %294 = vst [vmem:[#allocation2 + $0x70] sm:$0xff] %v236
  %295 = vst.msk [vmem:[#allocation2 + $0x78] sm:$0xff] %vm142, %v238
  %296 = vst [vmem:[#allocation2 + $0x80] sm:$0xff] %v242
  %297 = vst.msk [vmem:[#allocation2 + $0x88] sm:$0xff] %vm142, %v244
  %298 = vst [vmem:[#allocation2 + $0x90] sm:$0xff] %v246
  %299 = vst.msk [vmem:[#allocation2 + $0x98] sm:$0xff] %vm142, %v248
  %300 = vst [vmem:[#allocation2 + $0xa0] sm:$0xff] %v252
  %301 = vst.msk [vmem:[#allocation2 + $0xa8] sm:$0xff] %vm142, %v254
  %302 = vst [vmem:[#allocation2 + $0xb0] sm:$0xff] %v256
  %303 = vst.msk [vmem:[#allocation2 + $0xb8] sm:$0xff] %vm142, %v258
  %304 = vst [vmem:[#allocation2 + $0xc0] sm:$0xff] %v262
  %305 = vst.msk [vmem:[#allocation2 + $0xc8] sm:$0xff] %vm142, %v264
  %306 = vst [vmem:[#allocation2 + $0xd0] sm:$0xff] %v266
  %307 = vst.msk [vmem:[#allocation2 + $0xd8] sm:$0xff] %vm142, %v268
  %308 = vst [vmem:[#allocation2 + $0xe0] sm:$0xff] %v272
  %309 = vst.msk [vmem:[#allocation2 + $0xe8] sm:$0xff] %vm142, %v274
  %310 = vst [vmem:[#allocation2 + $0xf0] sm:$0xff] %v276
  %311 = vst.msk [vmem:[#allocation2 + $0xf8] sm:$0xff] %vm142, %v278
  %v312 = vld [vmem:[%s3] sm:$0xf]
  %v313 = vld [vmem:[%s3 + $0x4] sm:$0xf]
  %v314 = vld [vmem:[%s3 + $0x8] sm:$0xf]
  %v315 = vld [vmem:[%s3 + $0xc] sm:$0xf]
  %v316 = vld [vmem:[%s3 + $0x10] sm:$0xf]
  %v317 = vld [vmem:[%s3 + $0x14] sm:$0xf]
  %v318 = vld [vmem:[%s3 + $0x18] sm:$0xf]
  %v319 = vld [vmem:[%s3 + $0x1c] sm:$0xf]
  %v320 = vld [vmem:[%s4] sm:$0xf]
  %v321 = vld [vmem:[%s4 + $0x4] sm:$0xf]
  %v322 = vld [vmem:[%s4 + $0x8] sm:$0xf]
  %v323 = vld [vmem:[%s4 + $0xc] sm:$0xf]
  %v324 = vld [vmem:[%s4 + $0x10] sm:$0xf]
  %v325 = vld [vmem:[%s4 + $0x14] sm:$0xf]
  %v326 = vld [vmem:[%s4 + $0x18] sm:$0xf]
  %v327 = vld [vmem:[%s4 + $0x1c] sm:$0xf]
  %v328 = vld [vmem:[%s5] sm:$0x1]
  %v330 = vlaneseq
  %v331 = vshrl.u32 %v330, 7
  %v332 = vsub.s32 0, %v331
  %v333 = vrot.slane %v328, %v332
  %v335 = vlaneseq
  %v336 = vand.u32 %v335, 127
  %vm337 = vcmp.lt.s32.totalorder %v336, 32
  %v338 = vld [vmem:[#allocation2] sm:$0xff]
  %v339 = vld [vmem:[#allocation2 + $0x8] sm:$0xff]
  %v340 = vld [vmem:[#allocation2 + $0x10] sm:$0xff]
  %v341 = vld [vmem:[#allocation2 + $0x18] sm:$0xff]
  %v350 = vunpack.c.l.b16 %v312
  %v351 = vunpack.c.l.b16 %v313
  %v352 = vunpack.c.l.b16 %v314
  %v353 = vunpack.c.l.b16 %v315
  %v354 = vunpack.c.l.b16 %v316
  %v355 = vunpack.c.l.b16 %v317
  %v356 = vunpack.c.l.b16 %v318
  %v357 = vunpack.c.l.b16 %v319
  %v358 = vpack.c.b16 %v351, %v350
  %v359 = vpack.c.b16 %v353, %v352
  %v360 = vpack.c.b16 %v355, %v354
  %v361 = vpack.c.b16 %v357, %v356
  %v367 = vsel %vm142, 0, 0
  %369 = vmatprep.subr.bf16.mxu0 0
  %370 = vmatpush1.bf16.msra.mxu0 %v358
  %371 = vmatprep.subr.bf16.mxu0 0
  %372 = vmatpush1.bf16.msra.mxu0 %v359
  %373 = vmatprep.subr.bf16.mxu0 0
  %374 = vmatpush1.bf16.msra.mxu0 %v360
  %375 = vmatprep.subr.bf16.mxu0 0
  %376 = vmatpush1.bf16.msra.mxu0 %v361
  %377 = vmatprep.subr.bf16.mxu0 0
  %378 = vmatpush1.bf16.msra.mxu0 0
  %379 = vmatprep.subr.bf16.mxu0 0
  %380 = vmatpush1.bf16.msra.mxu0 0
  %381 = vmatprep.subr.bf16.mxu0 0
  %382 = vmatpush1.bf16.msra.mxu0 0
  %383 = vmatprep.subr.bf16.mxu0 0
  %384 = vmatpush1.bf16.msra.mxu0 0
  %385 = vmatprep.subr.bf16.mxu0 0
  %386 = vmatpush1.bf16.msra.mxu0 0
  %387 = vmatprep.subr.bf16.mxu0 0
  %388 = vmatpush1.bf16.msra.mxu0 0
  %389 = vmatprep.subr.bf16.mxu0 0
  %390 = vmatpush1.bf16.msra.mxu0 0
  %391 = vmatprep.subr.bf16.mxu0 0
  %392 = vmatpush1.bf16.msra.mxu0 0
  %393 = vmatprep.subr.bf16.mxu0 0
  %394 = vmatpush1.bf16.msra.mxu0 0
  %395 = vmatprep.subr.bf16.mxu0 0
  %396 = vmatpush1.bf16.msra.mxu0 0
  %397 = vmatprep.subr.bf16.mxu0 0
  %398 = vmatpush1.bf16.msra.mxu0 0
  %399 = vmatprep.subr.bf16.mxu0 0
  %400 = vmatpush1.bf16.msra.mxu0 0
  %401 = vmatprep.mubr.bf16.mxu0 0
  %402 = vmatmul.mubr.bf16.gmra.mrb[0].mxu0 %v367
  %v403 = vpop.f32.mrb[0].mxu0
  %v404 = vadd.f32 0.0, %v403
  %v405 = vpop.f32.mrb[0].mxu0
  %v406 = vpop.f32.mrb[0].mxu0
  %v407 = vadd.f32 0.0, %v406
  %v408 = vpop.f32.mrb[0].mxu0
  %409 = vdwg.mxu0
  %v410 = vadd.f32 %v338, %v404
  %v411 = vadd.f32 %v340, %v407
  %v412 = vxor.u32 %v410, 2147483648
  %v413 = vxor.u32 %v411, 2147483648
  %v414 = vmul.f32 %v412, 1.442695
  %v415 = vpow.pop %v414
  %v416 = vmul.f32 %v413, 1.442695
  %v417 = vpow.pop %v416
  %v418 = vadd.f32 %v415, 1.0
  %v419 = vadd.f32 %v417, 1.0
  %v420 = vrcp.pop %v418
  %v421 = vmul.f32 1.0, %v420
  %v422 = vrcp.pop %v419
  %v423 = vmul.f32 1.0, %v422
  %v432 = vunpack.c.l.b16 %v320
  %v433 = vunpack.c.l.b16 %v321
  %v434 = vunpack.c.l.b16 %v322
  %v435 = vunpack.c.l.b16 %v323
  %v436 = vunpack.c.l.b16 %v324
  %v437 = vunpack.c.l.b16 %v325
  %v438 = vunpack.c.l.b16 %v326
  %v439 = vunpack.c.l.b16 %v327
  %v440 = vpack.c.b16 %v433, %v432
  %v441 = vpack.c.b16 %v435, %v434
  %v442 = vpack.c.b16 %v437, %v436
  %v443 = vpack.c.b16 %v439, %v438
  %448 = vmatprep.subr.bf16.mxu0 0
  %449 = vmatpush1.bf16.msra.mxu0 %v440
  %450 = vmatprep.subr.bf16.mxu0 0
  %451 = vmatpush1.bf16.msra.mxu0 %v441
  %452 = vmatprep.subr.bf16.mxu0 0
  %453 = vmatpush1.bf16.msra.mxu0 %v442
  %454 = vmatprep.subr.bf16.mxu0 0
  %455 = vmatpush1.bf16.msra.mxu0 %v443
  %456 = vmatprep.subr.bf16.mxu0 0
  %457 = vmatpush1.bf16.msra.mxu0 0
  %458 = vmatprep.subr.bf16.mxu0 0
  %459 = vmatpush1.bf16.msra.mxu0 0
  %460 = vmatprep.subr.bf16.mxu0 0
  %461 = vmatpush1.bf16.msra.mxu0 0
  %462 = vmatprep.subr.bf16.mxu0 0
  %463 = vmatpush1.bf16.msra.mxu0 0
  %464 = vmatprep.subr.bf16.mxu0 0
  %465 = vmatpush1.bf16.msra.mxu0 0
  %466 = vmatprep.subr.bf16.mxu0 0
  %467 = vmatpush1.bf16.msra.mxu0 0
  %468 = vmatprep.subr.bf16.mxu0 0
  %469 = vmatpush1.bf16.msra.mxu0 0
  %470 = vmatprep.subr.bf16.mxu0 0
  %471 = vmatpush1.bf16.msra.mxu0 0
  %472 = vmatprep.subr.bf16.mxu0 0
  %473 = vmatpush1.bf16.msra.mxu0 0
  %474 = vmatprep.subr.bf16.mxu0 0
  %475 = vmatpush1.bf16.msra.mxu0 0
  %476 = vmatprep.subr.bf16.mxu0 0
  %477 = vmatpush1.bf16.msra.mxu0 0
  %478 = vmatprep.subr.bf16.mxu0 0
  %479 = vmatpush1.bf16.msra.mxu0 0
  %480 = vmatprep.mubr.bf16.mxu0 0
  %481 = vmatmul.mubr.bf16.gmra.mrb[0].mxu0 %v367
  %v482 = vpop.f32.mrb[0].mxu0
  %v483 = vadd.f32 %v333, %v482
  %v484 = vpop.f32.mrb[0].mxu0
  %v485 = vpop.f32.mrb[0].mxu0
  %v486 = vadd.f32 %v333, %v485
  %v487 = vpop.f32.mrb[0].mxu0
  %488 = vdwg.mxu0
  %v489 = vmul.f32 %v421, %v483
  %v490 = vmul.f32 %v423, %v486
  %v491 = vadd.f32 %v339, %v489
  %v492 = vadd.f32 %v341, %v490
  %v493 = vtanh.pop %v491
  %v494 = vtanh.pop %v492
  %v495 = vsub.f32 1.0, %v421
  %v496 = vsub.f32 1.0, %v423
  %499 = vrot.lane.b32.xlu0 %v493, 64
  %v500 = vpop.permute.xlu0 %499
  %501 = vrot.lane.b32.xlu0 %v494, 64
  %v502 = vpop.permute.xlu0 %501
  %v505 = vmul.f32 %v495, %v500
  %v506 = vmul.f32 %v496, %v502
  %v507 = vmul.f32 %v421, 0.0
  %v508 = vmul.f32 %v423, 0.0
  %v509 = vadd.f32 %v505, %v507
  %v510 = vadd.f32 %v506, %v508
  %v511 = vld [vmem:[#allocation2 + $0x20] sm:$0xff]
  %v512 = vld [vmem:[#allocation2 + $0x28] sm:$0xff]
  %v513 = vld [vmem:[#allocation2 + $0x30] sm:$0xff]
  %v514 = vld [vmem:[#allocation2 + $0x38] sm:$0xff]
  %v515 = vpack.c.bf16 %v510, %v509
  %517 = vrot.lane.b32.xlu0 %v515, 64
  %v518 = vpop.permute.xlu0 %517
  %v520 = vsel %vm142, %v518, 0
  %522 = vmatprep.subr.bf16.mxu0 0
  %523 = vmatpush1.bf16.msra.mxu0 %v358
  %524 = vmatprep.subr.bf16.mxu0 0
  %525 = vmatpush1.bf16.msra.mxu0 %v359
  %526 = vmatprep.subr.bf16.mxu0 0
  %527 = vmatpush1.bf16.msra.mxu0 %v360
  %528 = vmatprep.subr.bf16.mxu0 0
  %529 = vmatpush1.bf16.msra.mxu0 %v361
  %530 = vmatprep.subr.bf16.mxu0 0
  %531 = vmatpush1.bf16.msra.mxu0 0
  %532 = vmatprep.subr.bf16.mxu0 0
  %533 = vmatpush1.bf16.msra.mxu0 0
  %534 = vmatprep.subr.bf16.mxu0 0
  %535 = vmatpush1.bf16.msra.mxu0 0
  %536 = vmatprep.subr.bf16.mxu0 0
  %537 = vmatpush1.bf16.msra.mxu0 0
  %538 = vmatprep.subr.bf16.mxu0 0
  %539 = vmatpush1.bf16.msra.mxu0 0
  %540 = vmatprep.subr.bf16.mxu0 0
  %541 = vmatpush1.bf16.msra.mxu0 0
  %542 = vmatprep.subr.bf16.mxu0 0
  %543 = vmatpush1.bf16.msra.mxu0 0
  %544 = vmatprep.subr.bf16.mxu0 0
  %545 = vmatpush1.bf16.msra.mxu0 0
  %546 = vmatprep.subr.bf16.mxu0 0
  %547 = vmatpush1.bf16.msra.mxu0 0
  %548 = vmatprep.subr.bf16.mxu0 0
  %549 = vmatpush1.bf16.msra.mxu0 0
  %550 = vmatprep.subr.bf16.mxu0 0
  %551 = vmatpush1.bf16.msra.mxu0 0
  %552 = vmatprep.subr.bf16.mxu0 0
  %553 = vmatpush1.bf16.msra.mxu0 0
  %554 = vmatprep.mubr.bf16.mxu0 0
  %555 = vmatmul.mubr.bf16.gmra.mrb[0].mxu0 %v520
  %v556 = vpop.f32.mrb[0].mxu0
  %v557 = vadd.f32 0.0, %v556
  %v558 = vpop.f32.mrb[0].mxu0
  %v559 = vpop.f32.mrb[0].mxu0
  %v560 = vadd.f32 0.0, %v559
  %v561 = vpop.f32.mrb[0].mxu0
  %562 = vdwg.mxu0
  %v563 = vadd.f32 %v511, %v557
  %v564 = vadd.f32 %v513, %v560
  %v565 = vxor.u32 %v563, 2147483648
  %v566 = vxor.u32 %v564, 2147483648
  %v567 = vmul.f32 %v565, 1.442695
  %v568 = vpow.pop %v567
  %v569 = vmul.f32 %v566, 1.442695
  %v570 = vpow.pop %v569
  %v571 = vadd.f32 %v568, 1.0
  %v572 = vadd.f32 %v570, 1.0
  %v573 = vrcp.pop %v571
  %v574 = vmul.f32 1.0, %v573
  %v575 = vrcp.pop %v572
  %v576 = vmul.f32 1.0, %v575
  %577 = vmatprep.subr.bf16.mxu0 0
  %578 = vmatpush1.bf16.msra.mxu0 %v440
  %579 = vmatprep.subr.bf16.mxu0 0
  %580 = vmatpush1.bf16.msra.mxu0 %v441
  %581 = vmatprep.subr.bf16.mxu0 0
  %582 = vmatpush1.bf16.msra.mxu0 %v442
  %583 = vmatprep.subr.bf16.mxu0 0
  %584 = vmatpush1.bf16.msra.mxu0 %v443
  %585 = vmatprep.subr.bf16.mxu0 0
  %586 = vmatpush1.bf16.msra.mxu0 0
  %587 = vmatprep.subr.bf16.mxu0 0
  %588 = vmatpush1.bf16.msra.mxu0 0
  %589 = vmatprep.subr.bf16.mxu0 0
  %590 = vmatpush1.bf16.msra.mxu0 0
  %591 = vmatprep.subr.bf16.mxu0 0
  %592 = vmatpush1.bf16.msra.mxu0 0
  %593 = vmatprep.subr.bf16.mxu0 0
  %594 = vmatpush1.bf16.msra.mxu0 0
  %595 = vmatprep.subr.bf16.mxu0 0
  %596 = vmatpush1.bf16.msra.mxu0 0
  %597 = vmatprep.subr.bf16.mxu0 0
  %598 = vmatpush1.bf16.msra.mxu0 0
  %599 = vmatprep.subr.bf16.mxu0 0
  %600 = vmatpush1.bf16.msra.mxu0 0
  %601 = vmatprep.subr.bf16.mxu0 0
  %602 = vmatpush1.bf16.msra.mxu0 0
  %603 = vmatprep.subr.bf16.mxu0 0
  %604 = vmatpush1.bf16.msra.mxu0 0
  %605 = vmatprep.subr.bf16.mxu0 0
  %606 = vmatpush1.bf16.msra.mxu0 0
  %607 = vmatprep.subr.bf16.mxu0 0
  %608 = vmatpush1.bf16.msra.mxu0 0
  %609 = vmatprep.mubr.bf16.mxu0 0
  %610 = vmatmul.mubr.bf16.gmra.mrb[0].mxu0 %v520
  %v611 = vpop.f32.mrb[0].mxu0
  %v612 = vadd.f32 %v333, %v611
  %v613 = vpop.f32.mrb[0].mxu0
  %v614 = vpop.f32.mrb[0].mxu0
  %v615 = vadd.f32 %v333, %v614
  %v616 = vpop.f32.mrb[0].mxu0
  %617 = vdwg.mxu0
  %v618 = vmul.f32 %v574, %v612
  %v619 = vmul.f32 %v576, %v615
  %v620 = vadd.f32 %v512, %v618
  %v621 = vadd.f32 %v514, %v619
  %v622 = vtanh.pop %v620
  %v623 = vtanh.pop %v621
  %v624 = vsub.f32 1.0, %v574
  %v625 = vsub.f32 1.0, %v576
  %628 = vrot.lane.b32.xlu0 %v622, 64
  %v629 = vpop.permute.xlu0 %628
  %630 = vrot.lane.b32.xlu0 %v623, 64
  %v631 = vpop.permute.xlu0 %630
  %v634 = vmul.f32 %v624, %v629
  %v635 = vmul.f32 %v625, %v631
  %v636 = vmul.f32 %v574, %v509
  %v637 = vmul.f32 %v576, %v510
  %v638 = vadd.f32 %v634, %v636
  %v639 = vadd.f32 %v635, %v637
  %v640 = vld [vmem:[#allocation2 + $0x40] sm:$0xff]
  %v641 = vld [vmem:[#allocation2 + $0x48] sm:$0xff]
  %v642 = vld [vmem:[#allocation2 + $0x50] sm:$0xff]
  %v643 = vld [vmem:[#allocation2 + $0x58] sm:$0xff]
  %v644 = vpack.c.bf16 %v639, %v638
  %646 = vrot.lane.b32.xlu0 %v644, 64
  %v647 = vpop.permute.xlu0 %646
  %v649 = vsel %vm142, %v647, 0
  %651 = vmatprep.subr.bf16.mxu0 0
  %652 = vmatpush1.bf16.msra.mxu0 %v358
  %653 = vmatprep.subr.bf16.mxu0 0
  %654 = vmatpush1.bf16.msra.mxu0 %v359
  %655 = vmatprep.subr.bf16.mxu0 0
  %656 = vmatpush1.bf16.msra.mxu0 %v360
  %657 = vmatprep.subr.bf16.mxu0 0
  %658 = vmatpush1.bf16.msra.mxu0 %v361
  %659 = vmatprep.subr.bf16.mxu0 0
  %660 = vmatpush1.bf16.msra.mxu0 0
  %661 = vmatprep.subr.bf16.mxu0 0
  %662 = vmatpush1.bf16.msra.mxu0 0
  %663 = vmatprep.subr.bf16.mxu0 0
  %664 = vmatpush1.bf16.msra.mxu0 0
  %665 = vmatprep.subr.bf16.mxu0 0
  %666 = vmatpush1.bf16.msra.mxu0 0
  %667 = vmatprep.subr.bf16.mxu0 0
  %668 = vmatpush1.bf16.msra.mxu0 0
  %669 = vmatprep.subr.bf16.mxu0 0
  %670 = vmatpush1.bf16.msra.mxu0 0
  %671 = vmatprep.subr.bf16.mxu0 0
  %672 = vmatpush1.bf16.msra.mxu0 0
  %673 = vmatprep.subr.bf16.mxu0 0
  %674 = vmatpush1.bf16.msra.mxu0 0
  %675 = vmatprep.subr.bf16.mxu0 0
  %676 = vmatpush1.bf16.msra.mxu0 0
  %677 = vmatprep.subr.bf16.mxu0 0
  %678 = vmatpush1.bf16.msra.mxu0 0
  %679 = vmatprep.subr.bf16.mxu0 0
  %680 = vmatpush1.bf16.msra.mxu0 0
  %681 = vmatprep.subr.bf16.mxu0 0
  %682 = vmatpush1.bf16.msra.mxu0 0
  %683 = vmatprep.mubr.bf16.mxu0 0
  %684 = vmatmul.mubr.bf16.gmra.mrb[0].mxu0 %v649
  %v685 = vpop.f32.mrb[0].mxu0
  %v686 = vadd.f32 0.0, %v685
  %v687 = vpop.f32.mrb[0].mxu0
  %v688 = vpop.f32.mrb[0].mxu0
  %v689 = vadd.f32 0.0, %v688
  %v690 = vpop.f32.mrb[0].mxu0
  %691 = vdwg.mxu0
  %v692 = vadd.f32 %v640, %v686
  %v693 = vadd.f32 %v642, %v689
  %v694 = vxor.u32 %v692, 2147483648
  %v695 = vxor.u32 %v693, 2147483648
  %v696 = vmul.f32 %v694, 1.442695
  %v697 = vpow.pop %v696
  %v698 = vmul.f32 %v695, 1.442695
  %v699 = vpow.pop %v698
  %v700 = vadd.f32 %v697, 1.0
  %v701 = vadd.f32 %v699, 1.0
  %v702 = vrcp.pop %v700
  %v703 = vmul.f32 1.0, %v702
  %v704 = vrcp.pop %v701
  %v705 = vmul.f32 1.0, %v704
  %706 = vmatprep.subr.bf16.mxu0 0
  %707 = vmatpush1.bf16.msra.mxu0 %v440
  %708 = vmatprep.subr.bf16.mxu0 0
  %709 = vmatpush1.bf16.msra.mxu0 %v441
  %710 = vmatprep.subr.bf16.mxu0 0
  %711 = vmatpush1.bf16.msra.mxu0 %v442
  %712 = vmatprep.subr.bf16.mxu0 0
  %713 = vmatpush1.bf16.msra.mxu0 %v443
  %714 = vmatprep.subr.bf16.mxu0 0
  %715 = vmatpush1.bf16.msra.mxu0 0
  %716 = vmatprep.subr.bf16.mxu0 0
  %717 = vmatpush1.bf16.msra.mxu0 0
  %718 = vmatprep.subr.bf16.mxu0 0
  %719 = vmatpush1.bf16.msra.mxu0 0
  %720 = vmatprep.subr.bf16.mxu0 0
  %721 = vmatpush1.bf16.msra.mxu0 0
  %722 = vmatprep.subr.bf16.mxu0 0
  %723 = vmatpush1.bf16.msra.mxu0 0
  %724 = vmatprep.subr.bf16.mxu0 0
  %725 = vmatpush1.bf16.msra.mxu0 0
  %726 = vmatprep.subr.bf16.mxu0 0
  %727 = vmatpush1.bf16.msra.mxu0 0
  %728 = vmatprep.subr.bf16.mxu0 0
  %729 = vmatpush1.bf16.msra.mxu0 0
  %730 = vmatprep.subr.bf16.mxu0 0
  %731 = vmatpush1.bf16.msra.mxu0 0
  %732 = vmatprep.subr.bf16.mxu0 0
  %733 = vmatpush1.bf16.msra.mxu0 0
  %734 = vmatprep.subr.bf16.mxu0 0
  %735 = vmatpush1.bf16.msra.mxu0 0
  %736 = vmatprep.subr.bf16.mxu0 0
  %737 = vmatpush1.bf16.msra.mxu0 0
  %738 = vmatprep.mubr.bf16.mxu0 0
  %739 = vmatmul.mubr.bf16.gmra.mrb[0].mxu0 %v649
  %v740 = vpop.f32.mrb[0].mxu0
  %v741 = vadd.f32 %v333, %v740
  %v742 = vpop.f32.mrb[0].mxu0
  %v743 = vpop.f32.mrb[0].mxu0
  %v744 = vadd.f32 %v333, %v743
  %v745 = vpop.f32.mrb[0].mxu0
  %746 = vdwg.mxu0
  %v747 = vmul.f32 %v703, %v741
  %v748 = vmul.f32 %v705, %v744
  %v749 = vadd.f32 %v641, %v747
  %v750 = vadd.f32 %v643, %v748
  %v751 = vtanh.pop %v749
  %v752 = vtanh.pop %v750
  %v753 = vsub.f32 1.0, %v703
  %v754 = vsub.f32 1.0, %v705
  %757 = vrot.lane.b32.xlu0 %v751, 64
  %v758 = vpop.permute.xlu0 %757
  %759 = vrot.lane.b32.xlu0 %v752, 64
  %v760 = vpop.permute.xlu0 %759
  %v763 = vmul.f32 %v753, %v758
  %v764 = vmul.f32 %v754, %v760
  %v765 = vmul.f32 %v703, %v638
  %v766 = vmul.f32 %v705, %v639
  %v767 = vadd.f32 %v763, %v765
  %v768 = vadd.f32 %v764, %v766
  %v769 = vld [vmem:[#allocation2 + $0x60] sm:$0xff]
  %v770 = vld [vmem:[#allocation2 + $0x68] sm:$0xff]
  %v771 = vld [vmem:[#allocation2 + $0x70] sm:$0xff]
  %v772 = vld [vmem:[#allocation2 + $0x78] sm:$0xff]
  %v773 = vpack.c.bf16 %v768, %v767
  %775 = vrot.lane.b32.xlu0 %v773, 64
  %v776 = vpop.permute.xlu0 %775
  %v778 = vsel %vm142, %v776, 0
  %780 = vmatprep.subr.bf16.mxu0 0
  %781 = vmatpush1.bf16.msra.mxu0 %v358
  %782 = vmatprep.subr.bf16.mxu0 0
  %783 = vmatpush1.bf16.msra.mxu0 %v359
  %784 = vmatprep.subr.bf16.mxu0 0
  %785 = vmatpush1.bf16.msra.mxu0 %v360
  %786 = vmatprep.subr.bf16.mxu0 0
  %787 = vmatpush1.bf16.msra.mxu0 %v361
  %788 = vmatprep.subr.bf16.mxu0 0
  %789 = vmatpush1.bf16.msra.mxu0 0
  %790 = vmatprep.subr.bf16.mxu0 0
  %791 = vmatpush1.bf16.msra.mxu0 0
  %792 = vmatprep.subr.bf16.mxu0 0
  %793 = vmatpush1.bf16.msra.mxu0 0
  %794 = vmatprep.subr.bf16.mxu0 0
  %795 = vmatpush1.bf16.msra.mxu0 0
  %796 = vmatprep.subr.bf16.mxu0 0
  %797 = vmatpush1.bf16.msra.mxu0 0
  %798 = vmatprep.subr.bf16.mxu0 0
  %799 = vmatpush1.bf16.msra.mxu0 0
  %800 = vmatprep.subr.bf16.mxu0 0
  %801 = vmatpush1.bf16.msra.mxu0 0
  %802 = vmatprep.subr.bf16.mxu0 0
  %803 = vmatpush1.bf16.msra.mxu0 0
  %804 = vmatprep.subr.bf16.mxu0 0
  %805 = vmatpush1.bf16.msra.mxu0 0
  %806 = vmatprep.subr.bf16.mxu0 0
  %807 = vmatpush1.bf16.msra.mxu0 0
  %808 = vmatprep.subr.bf16.mxu0 0
  %809 = vmatpush1.bf16.msra.mxu0 0
  %810 = vmatprep.subr.bf16.mxu0 0
  %811 = vmatpush1.bf16.msra.mxu0 0
  %812 = vmatprep.mubr.bf16.mxu0 0
  %813 = vmatmul.mubr.bf16.gmra.mrb[0].mxu0 %v778
  %v814 = vpop.f32.mrb[0].mxu0
  %v815 = vadd.f32 0.0, %v814
  %v816 = vpop.f32.mrb[0].mxu0
  %v817 = vpop.f32.mrb[0].mxu0
  %v818 = vadd.f32 0.0, %v817
  %v819 = vpop.f32.mrb[0].mxu0
  %820 = vdwg.mxu0
  %v821 = vadd.f32 %v769, %v815
  %v822 = vadd.f32 %v771, %v818
  %v823 = vxor.u32 %v821, 2147483648
  %v824 = vxor.u32 %v822, 2147483648
  %v825 = vmul.f32 %v823, 1.442695
  %v826 = vpow.pop %v825
  %v827 = vmul.f32 %v824, 1.442695
  %v828 = vpow.pop %v827
  %v829 = vadd.f32 %v826, 1.0
  %v830 = vadd.f32 %v828, 1.0
  %v831 = vrcp.pop %v829
  %v832 = vmul.f32 1.0, %v831
  %v833 = vrcp.pop %v830
  %v834 = vmul.f32 1.0, %v833
  %835 = vmatprep.subr.bf16.mxu0 0
  %836 = vmatpush1.bf16.msra.mxu0 %v440
  %837 = vmatprep.subr.bf16.mxu0 0
  %838 = vmatpush1.bf16.msra.mxu0 %v441
  %839 = vmatprep.subr.bf16.mxu0 0
  %840 = vmatpush1.bf16.msra.mxu0 %v442
  %841 = vmatprep.subr.bf16.mxu0 0
  %842 = vmatpush1.bf16.msra.mxu0 %v443
  %843 = vmatprep.subr.bf16.mxu0 0
  %844 = vmatpush1.bf16.msra.mxu0 0
  %845 = vmatprep.subr.bf16.mxu0 0
  %846 = vmatpush1.bf16.msra.mxu0 0
  %847 = vmatprep.subr.bf16.mxu0 0
  %848 = vmatpush1.bf16.msra.mxu0 0
  %849 = vmatprep.subr.bf16.mxu0 0
  %850 = vmatpush1.bf16.msra.mxu0 0
  %851 = vmatprep.subr.bf16.mxu0 0
  %852 = vmatpush1.bf16.msra.mxu0 0
  %853 = vmatprep.subr.bf16.mxu0 0
  %854 = vmatpush1.bf16.msra.mxu0 0
  %855 = vmatprep.subr.bf16.mxu0 0
  %856 = vmatpush1.bf16.msra.mxu0 0
  %857 = vmatprep.subr.bf16.mxu0 0
  %858 = vmatpush1.bf16.msra.mxu0 0
  %859 = vmatprep.subr.bf16.mxu0 0
  %860 = vmatpush1.bf16.msra.mxu0 0
  %861 = vmatprep.subr.bf16.mxu0 0
  %862 = vmatpush1.bf16.msra.mxu0 0
  %863 = vmatprep.subr.bf16.mxu0 0
  %864 = vmatpush1.bf16.msra.mxu0 0
  %865 = vmatprep.subr.bf16.mxu0 0
  %866 = vmatpush1.bf16.msra.mxu0 0
  %867 = vmatprep.mubr.bf16.mxu0 0
  %868 = vmatmul.mubr.bf16.gmra.mrb[0].mxu0 %v778
  %v869 = vpop.f32.mrb[0].mxu0
  %v870 = vadd.f32 %v333, %v869
  %v871 = vpop.f32.mrb[0].mxu0
  %v872 = vpop.f32.mrb[0].mxu0
  %v873 = vadd.f32 %v333, %v872
  %v874 = vpop.f32.mrb[0].mxu0
  %875 = vdwg.mxu0
  %v876 = vmul.f32 %v832, %v870
  %v877 = vmul.f32 %v834, %v873
  %v878 = vadd.f32 %v770, %v876
  %v879 = vadd.f32 %v772, %v877
  %v880 = vtanh.pop %v878
  %v881 = vtanh.pop %v879
  %v882 = vsub.f32 1.0, %v832
  %v883 = vsub.f32 1.0, %v834
  %886 = vrot.lane.b32.xlu0 %v880, 64
  %v887 = vpop.permute.xlu0 %886
  %888 = vrot.lane.b32.xlu0 %v881, 64
  %v889 = vpop.permute.xlu0 %888
  %v892 = vmul.f32 %v882, %v887
  %v893 = vmul.f32 %v883, %v889
  %v894 = vmul.f32 %v832, %v767
  %v895 = vmul.f32 %v834, %v768
  %v896 = vadd.f32 %v892, %v894
  %v897 = vadd.f32 %v893, %v895
  %v898 = vld [vmem:[#allocation2 + $0x80] sm:$0xff]
  %v899 = vld [vmem:[#allocation2 + $0x88] sm:$0xff]
  %v900 = vld [vmem:[#allocation2 + $0x90] sm:$0xff]
  %v901 = vld [vmem:[#allocation2 + $0x98] sm:$0xff]
  %v902 = vpack.c.bf16 %v897, %v896
  %904 = vrot.lane.b32.xlu0 %v902, 64
  %v905 = vpop.permute.xlu0 %904
  %v907 = vsel %vm142, %v905, 0
  %909 = vmatprep.subr.bf16.mxu0 0
  %910 = vmatpush1.bf16.msra.mxu0 %v358
  %911 = vmatprep.subr.bf16.mxu0 0
  %912 = vmatpush1.bf16.msra.mxu0 %v359
  %913 = vmatprep.subr.bf16.mxu0 0
  %914 = vmatpush1.bf16.msra.mxu0 %v360
  %915 = vmatprep.subr.bf16.mxu0 0
  %916 = vmatpush1.bf16.msra.mxu0 %v361
  %917 = vmatprep.subr.bf16.mxu0 0
  %918 = vmatpush1.bf16.msra.mxu0 0
  %919 = vmatprep.subr.bf16.mxu0 0
  %920 = vmatpush1.bf16.msra.mxu0 0
  %921 = vmatprep.subr.bf16.mxu0 0
  %922 = vmatpush1.bf16.msra.mxu0 0
  %923 = vmatprep.subr.bf16.mxu0 0
  %924 = vmatpush1.bf16.msra.mxu0 0
  %925 = vmatprep.subr.bf16.mxu0 0
  %926 = vmatpush1.bf16.msra.mxu0 0
  %927 = vmatprep.subr.bf16.mxu0 0
  %928 = vmatpush1.bf16.msra.mxu0 0
  %929 = vmatprep.subr.bf16.mxu0 0
  %930 = vmatpush1.bf16.msra.mxu0 0
  %931 = vmatprep.subr.bf16.mxu0 0
  %932 = vmatpush1.bf16.msra.mxu0 0
  %933 = vmatprep.subr.bf16.mxu0 0
  %934 = vmatpush1.bf16.msra.mxu0 0
  %935 = vmatprep.subr.bf16.mxu0 0
  %936 = vmatpush1.bf16.msra.mxu0 0
  %937 = vmatprep.subr.bf16.mxu0 0
  %938 = vmatpush1.bf16.msra.mxu0 0
  %939 = vmatprep.subr.bf16.mxu0 0
  %940 = vmatpush1.bf16.msra.mxu0 0
  %941 = vmatprep.mubr.bf16.mxu0 0
  %942 = vmatmul.mubr.bf16.gmra.mrb[0].mxu0 %v907
  %v943 = vpop.f32.mrb[0].mxu0
  %v944 = vadd.f32 0.0, %v943
  %v945 = vpop.f32.mrb[0].mxu0
  %v946 = vpop.f32.mrb[0].mxu0
  %v947 = vadd.f32 0.0, %v946
  %v948 = vpop.f32.mrb[0].mxu0
  %949 = vdwg.mxu0
  %v950 = vadd.f32 %v898, %v944
  %v951 = vadd.f32 %v900, %v947
  %v952 = vxor.u32 %v950, 2147483648
  %v953 = vxor.u32 %v951, 2147483648
  %v954 = vmul.f32 %v952, 1.442695
  %v955 = vpow.pop %v954
  %v956 = vmul.f32 %v953, 1.442695
  %v957 = vpow.pop %v956
  %v958 = vadd.f32 %v955, 1.0
  %v959 = vadd.f32 %v957, 1.0
  %v960 = vrcp.pop %v958
  %v961 = vmul.f32 1.0, %v960
  %v962 = vrcp.pop %v959
  %v963 = vmul.f32 1.0, %v962
  %964 = vmatprep.subr.bf16.mxu0 0
  %965 = vmatpush1.bf16.msra.mxu0 %v440
  %966 = vmatprep.subr.bf16.mxu0 0
  %967 = vmatpush1.bf16.msra.mxu0 %v441
  %968 = vmatprep.subr.bf16.mxu0 0
  %969 = vmatpush1.bf16.msra.mxu0 %v442
  %970 = vmatprep.subr.bf16.mxu0 0
  %971 = vmatpush1.bf16.msra.mxu0 %v443
  %972 = vmatprep.subr.bf16.mxu0 0
  %973 = vmatpush1.bf16.msra.mxu0 0
  %974 = vmatprep.subr.bf16.mxu0 0
  %975 = vmatpush1.bf16.msra.mxu0 0
  %976 = vmatprep.subr.bf16.mxu0 0
  %977 = vmatpush1.bf16.msra.mxu0 0
  %978 = vmatprep.subr.bf16.mxu0 0
  %979 = vmatpush1.bf16.msra.mxu0 0
  %980 = vmatprep.subr.bf16.mxu0 0
  %981 = vmatpush1.bf16.msra.mxu0 0
  %982 = vmatprep.subr.bf16.mxu0 0
  %983 = vmatpush1.bf16.msra.mxu0 0
  %984 = vmatprep.subr.bf16.mxu0 0
  %985 = vmatpush1.bf16.msra.mxu0 0
  %986 = vmatprep.subr.bf16.mxu0 0
  %987 = vmatpush1.bf16.msra.mxu0 0
  %988 = vmatprep.subr.bf16.mxu0 0
  %989 = vmatpush1.bf16.msra.mxu0 0
  %990 = vmatprep.subr.bf16.mxu0 0
  %991 = vmatpush1.bf16.msra.mxu0 0
  %992 = vmatprep.subr.bf16.mxu0 0
  %993 = vmatpush1.bf16.msra.mxu0 0
  %994 = vmatprep.subr.bf16.mxu0 0
  %995 = vmatpush1.bf16.msra.mxu0 0
  %996 = vmatprep.mubr.bf16.mxu0 0
  %997 = vmatmul.mubr.bf16.gmra.mrb[0].mxu0 %v907
  %v998 = vpop.f32.mrb[0].mxu0
  %v999 = vadd.f32 %v333, %v998
  %v1000 = vpop.f32.mrb[0].mxu0
  %v1001 = vpop.f32.mrb[0].mxu0
  %v1002 = vadd.f32 %v333, %v1001
  %v1003 = vpop.f32.mrb[0].mxu0
  %1004 = vdwg.mxu0
  %v1005 = vmul.f32 %v961, %v999
  %v1006 = vmul.f32 %v963, %v1002
  %v1007 = vadd.f32 %v899, %v1005
  %v1008 = vadd.f32 %v901, %v1006
  %v1009 = vtanh.pop %v1007
  %v1010 = vtanh.pop %v1008
  %v1011 = vsub.f32 1.0, %v961
  %v1012 = vsub.f32 1.0, %v963
  %1015 = vrot.lane.b32.xlu0 %v1009, 64
  %v1016 = vpop.permute.xlu0 %1015
  %1017 = vrot.lane.b32.xlu0 %v1010, 64
  %v1018 = vpop.permute.xlu0 %1017
  %v1021 = vmul.f32 %v1011, %v1016
  %v1022 = vmul.f32 %v1012, %v1018
  %v1023 = vmul.f32 %v961, %v896
  %v1024 = vmul.f32 %v963, %v897
  %v1025 = vadd.f32 %v1021, %v1023
  %v1026 = vadd.f32 %v1022, %v1024
  %v1027 = vld [vmem:[#allocation2 + $0xa0] sm:$0xff]
  %v1028 = vld [vmem:[#allocation2 + $0xa8] sm:$0xff]
  %v1029 = vld [vmem:[#allocation2 + $0xb0] sm:$0xff]
  %v1030 = vld [vmem:[#allocation2 + $0xb8] sm:$0xff]
  %v1031 = vpack.c.bf16 %v1026, %v1025
  %1033 = vrot.lane.b32.xlu0 %v1031, 64
  %v1034 = vpop.permute.xlu0 %1033
  %v1036 = vsel %vm142, %v1034, 0
  %1038 = vmatprep.subr.bf16.mxu0 0
  %1039 = vmatpush1.bf16.msra.mxu0 %v358
  %1040 = vmatprep.subr.bf16.mxu0 0
  %1041 = vmatpush1.bf16.msra.mxu0 %v359
  %1042 = vmatprep.subr.bf16.mxu0 0
  %1043 = vmatpush1.bf16.msra.mxu0 %v360
  %1044 = vmatprep.subr.bf16.mxu0 0
  %1045 = vmatpush1.bf16.msra.mxu0 %v361
  %1046 = vmatprep.subr.bf16.mxu0 0
  %1047 = vmatpush1.bf16.msra.mxu0 0
  %1048 = vmatprep.subr.bf16.mxu0 0
  %1049 = vmatpush1.bf16.msra.mxu0 0
  %1050 = vmatprep.subr.bf16.mxu0 0
  %1051 = vmatpush1.bf16.msra.mxu0 0
  %1052 = vmatprep.subr.bf16.mxu0 0
  %1053 = vmatpush1.bf16.msra.mxu0 0
  %1054 = vmatprep.subr.bf16.mxu0 0
  %1055 = vmatpush1.bf16.msra.mxu0 0
  %1056 = vmatprep.subr.bf16.mxu0 0
  %1057 = vmatpush1.bf16.msra.mxu0 0
  %1058 = vmatprep.subr.bf16.mxu0 0
  %1059 = vmatpush1.bf16.msra.mxu0 0
  %1060 = vmatprep.subr.bf16.mxu0 0
  %1061 = vmatpush1.bf16.msra.mxu0 0
  %1062 = vmatprep.subr.bf16.mxu0 0
  %1063 = vmatpush1.bf16.msra.mxu0 0
  %1064 = vmatprep.subr.bf16.mxu0 0
  %1065 = vmatpush1.bf16.msra.mxu0 0
  %1066 = vmatprep.subr.bf16.mxu0 0
  %1067 = vmatpush1.bf16.msra.mxu0 0
  %1068 = vmatprep.subr.bf16.mxu0 0
  %1069 = vmatpush1.bf16.msra.mxu0 0
  %1070 = vmatprep.mubr.bf16.mxu0 0
  %1071 = vmatmul.mubr.bf16.gmra.mrb[0].mxu0 %v1036
  %v1072 = vpop.f32.mrb[0].mxu0
  %v1073 = vadd.f32 0.0, %v1072
  %v1074 = vpop.f32.mrb[0].mxu0
  %v1075 = vpop.f32.mrb[0].mxu0
  %v1076 = vadd.f32 0.0, %v1075
  %v1077 = vpop.f32.mrb[0].mxu0
  %1078 = vdwg.mxu0
  %v1079 = vadd.f32 %v1027, %v1073
  %v1080 = vadd.f32 %v1029, %v1076
  %v1081 = vxor.u32 %v1079, 2147483648
  %v1082 = vxor.u32 %v1080, 2147483648
  %v1083 = vmul.f32 %v1081, 1.442695
  %v1084 = vpow.pop %v1083
  %v1085 = vmul.f32 %v1082, 1.442695
  %v1086 = vpow.pop %v1085
  %v1087 = vadd.f32 %v1084, 1.0
  %v1088 = vadd.f32 %v1086, 1.0
  %v1089 = vrcp.pop %v1087
  %v1090 = vmul.f32 1.0, %v1089
  %v1091 = vrcp.pop %v1088
  %v1092 = vmul.f32 1.0, %v1091
  %1093 = vmatprep.subr.bf16.mxu0 0
  %1094 = vmatpush1.bf16.msra.mxu0 %v440
  %1095 = vmatprep.subr.bf16.mxu0 0
  %1096 = vmatpush1.bf16.msra.mxu0 %v441
  %1097 = vmatprep.subr.bf16.mxu0 0
  %1098 = vmatpush1.bf16.msra.mxu0 %v442
  %1099 = vmatprep.subr.bf16.mxu0 0
  %1100 = vmatpush1.bf16.msra.mxu0 %v443
  %1101 = vmatprep.subr.bf16.mxu0 0
  %1102 = vmatpush1.bf16.msra.mxu0 0
  %1103 = vmatprep.subr.bf16.mxu0 0
  %1104 = vmatpush1.bf16.msra.mxu0 0
  %1105 = vmatprep.subr.bf16.mxu0 0
  %1106 = vmatpush1.bf16.msra.mxu0 0
  %1107 = vmatprep.subr.bf16.mxu0 0
  %1108 = vmatpush1.bf16.msra.mxu0 0
  %1109 = vmatprep.subr.bf16.mxu0 0
  %1110 = vmatpush1.bf16.msra.mxu0 0
  %1111 = vmatprep.subr.bf16.mxu0 0
  %1112 = vmatpush1.bf16.msra.mxu0 0
  %1113 = vmatprep.subr.bf16.mxu0 0
  %1114 = vmatpush1.bf16.msra.mxu0 0
  %1115 = vmatprep.subr.bf16.mxu0 0
  %1116 = vmatpush1.bf16.msra.mxu0 0
  %1117 = vmatprep.subr.bf16.mxu0 0
  %1118 = vmatpush1.bf16.msra.mxu0 0
  %1119 = vmatprep.subr.bf16.mxu0 0
  %1120 = vmatpush1.bf16.msra.mxu0 0
  %1121 = vmatprep.subr.bf16.mxu0 0
  %1122 = vmatpush1.bf16.msra.mxu0 0
  %1123 = vmatprep.subr.bf16.mxu0 0
  %1124 = vmatpush1.bf16.msra.mxu0 0
  %1125 = vmatprep.mubr.bf16.mxu0 0
  %1126 = vmatmul.mubr.bf16.gmra.mrb[0].mxu0 %v1036
  %v1127 = vpop.f32.mrb[0].mxu0
  %v1128 = vadd.f32 %v333, %v1127
  %v1129 = vpop.f32.mrb[0].mxu0
  %v1130 = vpop.f32.mrb[0].mxu0
  %v1131 = vadd.f32 %v333, %v1130
  %v1132 = vpop.f32.mrb[0].mxu0
  %1133 = vdwg.mxu0
  %v1134 = vmul.f32 %v1090, %v1128
  %v1135 = vmul.f32 %v1092, %v1131
  %v1136 = vadd.f32 %v1028, %v1134
  %v1137 = vadd.f32 %v1030, %v1135
  %v1138 = vtanh.pop %v1136
  %v1139 = vtanh.pop %v1137
  %v1140 = vsub.f32 1.0, %v1090
  %v1141 = vsub.f32 1.0, %v1092
  %1144 = vrot.lane.b32.xlu0 %v1138, 64
  %v1145 = vpop.permute.xlu0 %1144
  %1146 = vrot.lane.b32.xlu0 %v1139, 64
  %v1147 = vpop.permute.xlu0 %1146
  %v1150 = vmul.f32 %v1140, %v1145
  %v1151 = vmul.f32 %v1141, %v1147
  %v1152 = vmul.f32 %v1090, %v1025
  %v1153 = vmul.f32 %v1092, %v1026
  %v1154 = vadd.f32 %v1150, %v1152
  %v1155 = vadd.f32 %v1151, %v1153
  %v1156 = vld [vmem:[#allocation2 + $0xc0] sm:$0xff]
  %v1157 = vld [vmem:[#allocation2 + $0xc8] sm:$0xff]
  %v1158 = vld [vmem:[#allocation2 + $0xd0] sm:$0xff]
  %v1159 = vld [vmem:[#allocation2 + $0xd8] sm:$0xff]
  %v1160 = vpack.c.bf16 %v1155, %v1154
  %1162 = vrot.lane.b32.xlu0 %v1160, 64
  %v1163 = vpop.permute.xlu0 %1162
  %v1165 = vsel %vm142, %v1163, 0
  %1167 = vmatprep.subr.bf16.mxu0 0
  %1168 = vmatpush1.bf16.msra.mxu0 %v358
  %1169 = vmatprep.subr.bf16.mxu0 0
  %1170 = vmatpush1.bf16.msra.mxu0 %v359
  %1171 = vmatprep.subr.bf16.mxu0 0
  %1172 = vmatpush1.bf16.msra.mxu0 %v360
  %1173 = vmatprep.subr.bf16.mxu0 0
  %1174 = vmatpush1.bf16.msra.mxu0 %v361
  %1175 = vmatprep.subr.bf16.mxu0 0
  %1176 = vmatpush1.bf16.msra.mxu0 0
  %1177 = vmatprep.subr.bf16.mxu0 0
  %1178 = vmatpush1.bf16.msra.mxu0 0
  %1179 = vmatprep.subr.bf16.mxu0 0
  %1180 = vmatpush1.bf16.msra.mxu0 0
  %1181 = vmatprep.subr.bf16.mxu0 0
  %1182 = vmatpush1.bf16.msra.mxu0 0
  %1183 = vmatprep.subr.bf16.mxu0 0
  %1184 = vmatpush1.bf16.msra.mxu0 0
  %1185 = vmatprep.subr.bf16.mxu0 0
  %1186 = vmatpush1.bf16.msra.mxu0 0
  %1187 = vmatprep.subr.bf16.mxu0 0
  %1188 = vmatpush1.bf16.msra.mxu0 0
  %1189 = vmatprep.subr.bf16.mxu0 0
  %1190 = vmatpush1.bf16.msra.mxu0 0
  %1191 = vmatprep.subr.bf16.mxu0 0
  %1192 = vmatpush1.bf16.msra.mxu0 0
  %1193 = vmatprep.subr.bf16.mxu0 0
  %1194 = vmatpush1.bf16.msra.mxu0 0
  %1195 = vmatprep.subr.bf16.mxu0 0
  %1196 = vmatpush1.bf16.msra.mxu0 0
  %1197 = vmatprep.subr.bf16.mxu0 0
  %1198 = vmatpush1.bf16.msra.mxu0 0
  %1199 = vmatprep.mubr.bf16.mxu0 0
  %1200 = vmatmul.mubr.bf16.gmra.mrb[0].mxu0 %v1165
  %v1201 = vpop.f32.mrb[0].mxu0
  %v1202 = vadd.f32 0.0, %v1201
  %v1203 = vpop.f32.mrb[0].mxu0
  %v1204 = vpop.f32.mrb[0].mxu0
  %v1205 = vadd.f32 0.0, %v1204
  %v1206 = vpop.f32.mrb[0].mxu0
  %1207 = vdwg.mxu0
  %v1208 = vadd.f32 %v1156, %v1202
  %v1209 = vadd.f32 %v1158, %v1205
  %v1210 = vxor.u32 %v1208, 2147483648
  %v1211 = vxor.u32 %v1209, 2147483648
  %v1212 = vmul.f32 %v1210, 1.442695
  %v1213 = vpow.pop %v1212
  %v1214 = vmul.f32 %v1211, 1.442695
  %v1215 = vpow.pop %v1214
  %v1216 = vadd.f32 %v1213, 1.0
  %v1217 = vadd.f32 %v1215, 1.0
  %v1218 = vrcp.pop %v1216
  %v1219 = vmul.f32 1.0, %v1218
  %v1220 = vrcp.pop %v1217
  %v1221 = vmul.f32 1.0, %v1220
  %1222 = vmatprep.subr.bf16.mxu0 0
  %1223 = vmatpush1.bf16.msra.mxu0 %v440
  %1224 = vmatprep.subr.bf16.mxu0 0
  %1225 = vmatpush1.bf16.msra.mxu0 %v441
  %1226 = vmatprep.subr.bf16.mxu0 0
  %1227 = vmatpush1.bf16.msra.mxu0 %v442
  %1228 = vmatprep.subr.bf16.mxu0 0
  %1229 = vmatpush1.bf16.msra.mxu0 %v443
  %1230 = vmatprep.subr.bf16.mxu0 0
  %1231 = vmatpush1.bf16.msra.mxu0 0
  %1232 = vmatprep.subr.bf16.mxu0 0
  %1233 = vmatpush1.bf16.msra.mxu0 0
  %1234 = vmatprep.subr.bf16.mxu0 0
  %1235 = vmatpush1.bf16.msra.mxu0 0
  %1236 = vmatprep.subr.bf16.mxu0 0
  %1237 = vmatpush1.bf16.msra.mxu0 0
  %1238 = vmatprep.subr.bf16.mxu0 0
  %1239 = vmatpush1.bf16.msra.mxu0 0
  %1240 = vmatprep.subr.bf16.mxu0 0
  %1241 = vmatpush1.bf16.msra.mxu0 0
  %1242 = vmatprep.subr.bf16.mxu0 0
  %1243 = vmatpush1.bf16.msra.mxu0 0
  %1244 = vmatprep.subr.bf16.mxu0 0
  %1245 = vmatpush1.bf16.msra.mxu0 0
  %1246 = vmatprep.subr.bf16.mxu0 0
  %1247 = vmatpush1.bf16.msra.mxu0 0
  %1248 = vmatprep.subr.bf16.mxu0 0
  %1249 = vmatpush1.bf16.msra.mxu0 0
  %1250 = vmatprep.subr.bf16.mxu0 0
  %1251 = vmatpush1.bf16.msra.mxu0 0
  %1252 = vmatprep.subr.bf16.mxu0 0
  %1253 = vmatpush1.bf16.msra.mxu0 0
  %1254 = vmatprep.mubr.bf16.mxu0 0
  %1255 = vmatmul.mubr.bf16.gmra.mrb[0].mxu0 %v1165
  %v1256 = vpop.f32.mrb[0].mxu0
  %v1257 = vadd.f32 %v333, %v1256
  %v1258 = vpop.f32.mrb[0].mxu0
  %v1259 = vpop.f32.mrb[0].mxu0
  %v1260 = vadd.f32 %v333, %v1259
  %v1261 = vpop.f32.mrb[0].mxu0
  %1262 = vdwg.mxu0
  %v1263 = vmul.f32 %v1219, %v1257
  %v1264 = vmul.f32 %v1221, %v1260
  %v1265 = vadd.f32 %v1157, %v1263
  %v1266 = vadd.f32 %v1159, %v1264
  %v1267 = vtanh.pop %v1265
  %v1268 = vtanh.pop %v1266
  %v1269 = vsub.f32 1.0, %v1219
  %v1270 = vsub.f32 1.0, %v1221
  %1273 = vrot.lane.b32.xlu0 %v1267, 64
  %v1274 = vpop.permute.xlu0 %1273
  %1275 = vrot.lane.b32.xlu0 %v1268, 64
  %v1276 = vpop.permute.xlu0 %1275
  %v1279 = vmul.f32 %v1269, %v1274
  %v1280 = vmul.f32 %v1270, %v1276
  %v1281 = vmul.f32 %v1219, %v1154
  %v1282 = vmul.f32 %v1221, %v1155
  %v1283 = vadd.f32 %v1279, %v1281
  %v1284 = vadd.f32 %v1280, %v1282
  %v1285 = vld [vmem:[#allocation2 + $0xe0] sm:$0xff]
  %v1286 = vld [vmem:[#allocation2 + $0xe8] sm:$0xff]
  %v1287 = vld [vmem:[#allocation2 + $0xf0] sm:$0xff]
  %v1288 = vld [vmem:[#allocation2 + $0xf8] sm:$0xff]
  %v1289 = vpack.c.bf16 %v1284, %v1283
  %1291 = vrot.lane.b32.xlu0 %v1289, 64
  %v1292 = vpop.permute.xlu0 %1291
  %v1294 = vsel %vm142, %v1292, 0
  %1296 = vmatprep.subr.bf16.mxu0 0
  %1297 = vmatpush1.bf16.msra.mxu0 %v358
  %1298 = vmatprep.subr.bf16.mxu0 0
  %1299 = vmatpush1.bf16.msra.mxu0 %v359
  %1300 = vmatprep.subr.bf16.mxu0 0
  %1301 = vmatpush1.bf16.msra.mxu0 %v360
  %1302 = vmatprep.subr.bf16.mxu0 0
  %1303 = vmatpush1.bf16.msra.mxu0 %v361
  %1304 = vmatprep.subr.bf16.mxu0 0
  %1305 = vmatpush1.bf16.msra.mxu0 0
  %1306 = vmatprep.subr.bf16.mxu0 0
  %1307 = vmatpush1.bf16.msra.mxu0 0
  %1308 = vmatprep.subr.bf16.mxu0 0
  %1309 = vmatpush1.bf16.msra.mxu0 0
  %1310 = vmatprep.subr.bf16.mxu0 0
  %1311 = vmatpush1.bf16.msra.mxu0 0
  %1312 = vmatprep.subr.bf16.mxu0 0
  %1313 = vmatpush1.bf16.msra.mxu0 0
  %1314 = vmatprep.subr.bf16.mxu0 0
  %1315 = vmatpush1.bf16.msra.mxu0 0
  %1316 = vmatprep.subr.bf16.mxu0 0
  %1317 = vmatpush1.bf16.msra.mxu0 0
  %1318 = vmatprep.subr.bf16.mxu0 0
  %1319 = vmatpush1.bf16.msra.mxu0 0
  %1320 = vmatprep.subr.bf16.mxu0 0
  %1321 = vmatpush1.bf16.msra.mxu0 0
  %1322 = vmatprep.subr.bf16.mxu0 0
  %1323 = vmatpush1.bf16.msra.mxu0 0
  %1324 = vmatprep.subr.bf16.mxu0 0
  %1325 = vmatpush1.bf16.msra.mxu0 0
  %1326 = vmatprep.subr.bf16.mxu0 0
  %1327 = vmatpush1.bf16.msra.mxu0 0
  %1328 = vmatprep.mubr.bf16.mxu0 0
  %1329 = vmatmul.mubr.bf16.gmra.mrb[0].mxu0 %v1294
  %v1330 = vpop.f32.mrb[0].mxu0
  %v1331 = vadd.f32 0.0, %v1330
  %v1332 = vpop.f32.mrb[0].mxu0
  %v1333 = vpop.f32.mrb[0].mxu0
  %v1334 = vadd.f32 0.0, %v1333
  %v1335 = vpop.f32.mrb[0].mxu0
  %1336 = vdwg.mxu0
  %v1337 = vadd.f32 %v1285, %v1331
  %v1338 = vadd.f32 %v1287, %v1334
  %v1339 = vxor.u32 %v1337, 2147483648
  %v1340 = vxor.u32 %v1338, 2147483648
  %v1341 = vmul.f32 %v1339, 1.442695
  %v1342 = vpow.pop %v1341
  %v1343 = vmul.f32 %v1340, 1.442695
  %v1344 = vpow.pop %v1343
  %v1345 = vadd.f32 %v1342, 1.0
  %v1346 = vadd.f32 %v1344, 1.0
  %v1347 = vrcp.pop %v1345
  %v1348 = vmul.f32 1.0, %v1347
  %v1349 = vrcp.pop %v1346
  %v1350 = vmul.f32 1.0, %v1349
  %1351 = vmatprep.subr.bf16.mxu0 0
  %1352 = vmatpush1.bf16.msra.mxu0 %v440
  %1353 = vmatprep.subr.bf16.mxu0 0
  %1354 = vmatpush1.bf16.msra.mxu0 %v441
  %1355 = vmatprep.subr.bf16.mxu0 0
  %1356 = vmatpush1.bf16.msra.mxu0 %v442
  %1357 = vmatprep.subr.bf16.mxu0 0
  %1358 = vmatpush1.bf16.msra.mxu0 %v443
  %1359 = vmatprep.subr.bf16.mxu0 0
  %1360 = vmatpush1.bf16.msra.mxu0 0
  %1361 = vmatprep.subr.bf16.mxu0 0
  %1362 = vmatpush1.bf16.msra.mxu0 0
  %1363 = vmatprep.subr.bf16.mxu0 0
  %1364 = vmatpush1.bf16.msra.mxu0 0
  %1365 = vmatprep.subr.bf16.mxu0 0
  %1366 = vmatpush1.bf16.msra.mxu0 0
  %1367 = vmatprep.subr.bf16.mxu0 0
  %1368 = vmatpush1.bf16.msra.mxu0 0
  %1369 = vmatprep.subr.bf16.mxu0 0
  %1370 = vmatpush1.bf16.msra.mxu0 0
  %1371 = vmatprep.subr.bf16.mxu0 0
  %1372 = vmatpush1.bf16.msra.mxu0 0
  %1373 = vmatprep.subr.bf16.mxu0 0
  %1374 = vmatpush1.bf16.msra.mxu0 0
  %1375 = vmatprep.subr.bf16.mxu0 0
  %1376 = vmatpush1.bf16.msra.mxu0 0
  %1377 = vmatprep.subr.bf16.mxu0 0
  %1378 = vmatpush1.bf16.msra.mxu0 0
  %1379 = vmatprep.subr.bf16.mxu0 0
  %1380 = vmatpush1.bf16.msra.mxu0 0
  %1381 = vmatprep.subr.bf16.mxu0 0
  %1382 = vmatpush1.bf16.msra.mxu0 0
  %1383 = vmatprep.mubr.bf16.mxu0 0
  %1384 = vmatmul.mubr.bf16.gmra.mrb[0].mxu0 %v1294
  %v1385 = vpop.f32.mrb[0].mxu0
  %v1386 = vadd.f32 %v333, %v1385
  %v1387 = vpop.f32.mrb[0].mxu0
  %v1388 = vpop.f32.mrb[0].mxu0
  %v1389 = vadd.f32 %v333, %v1388
  %v1390 = vpop.f32.mrb[0].mxu0
  %1391 = vdwg.mxu0
  %v1392 = vmul.f32 %v1348, %v1386
  %v1393 = vmul.f32 %v1350, %v1389
  %v1394 = vadd.f32 %v1286, %v1392
  %v1395 = vadd.f32 %v1288, %v1393
  %v1396 = vtanh.pop %v1394
  %v1397 = vtanh.pop %v1395
  %v1398 = vsub.f32 1.0, %v1348
  %v1399 = vsub.f32 1.0, %v1350
  %1402 = vrot.lane.b32.xlu0 %v1396, 64
  %v1403 = vpop.permute.xlu0 %1402
  %1404 = vrot.lane.b32.xlu0 %v1397, 64
  %v1405 = vpop.permute.xlu0 %1404
  %v1408 = vmul.f32 %v1398, %v1403
  %v1409 = vmul.f32 %v1399, %v1405
  %v1410 = vmul.f32 %v1348, %v1283
  %v1411 = vmul.f32 %v1350, %v1284
  %v1412 = vadd.f32 %v1408, %v1410
  %v1413 = vadd.f32 %v1409, %v1411
  %1416 = vrot.lane.b32.xlu0 %v509, 64
  %v1417 = vpop.permute.xlu0 %1416
  %1418 = vrot.lane.b32.xlu0 %v510, 64
  %v1419 = vpop.permute.xlu0 %1418
  %1424 = vrot.lane.b32.xlu0 %v1412, 64
  %v1425 = vpop.permute.xlu0 %1424
  %1426 = vrot.lane.b32.xlu0 %v1413, 64
  %v1427 = vpop.permute.xlu0 %1426
  %v1430 = vsel %vm337, %v1417, %v1425
  %v1431 = vsel %vm337, %v1419, %v1427
  %1432 = vst.msk [vmem:[%s6] sm:$0xff] %vm142, %v1430
  %1433 = vst.msk [vmem:[%s6 + $0x8] sm:$0xff] %vm142, %v1431
  %1436 = vrot.lane.b32.xlu0 %v638, 64
  %v1437 = vpop.permute.xlu0 %1436
  %1438 = vrot.lane.b32.xlu0 %v639, 64
  %v1439 = vpop.permute.xlu0 %1438
  %1444 = vrot.lane.b32.xlu0 %v1283, 64
  %v1445 = vpop.permute.xlu0 %1444
  %1446 = vrot.lane.b32.xlu0 %v1284, 64
  %v1447 = vpop.permute.xlu0 %1446
  %v1450 = vsel %vm337, %v1437, %v1445
  %v1451 = vsel %vm337, %v1439, %v1447
  %s1452 = scalar_lea.vmem %s6, 16
  %1453 = vst.msk [vmem:[%s1452] sm:$0xff] %vm142, %v1450
  %1454 = vst.msk [vmem:[%s1452 + $0x8] sm:$0xff] %vm142, %v1451
  %1457 = vrot.lane.b32.xlu0 %v767, 64
  %v1458 = vpop.permute.xlu0 %1457
  %1459 = vrot.lane.b32.xlu0 %v768, 64
  %v1460 = vpop.permute.xlu0 %1459
  %1465 = vrot.lane.b32.xlu0 %v1154, 64
  %v1466 = vpop.permute.xlu0 %1465
  %1467 = vrot.lane.b32.xlu0 %v1155, 64
  %v1468 = vpop.permute.xlu0 %1467
  %v1471 = vsel %vm337, %v1458, %v1466
  %v1472 = vsel %vm337, %v1460, %v1468
  %s1473 = scalar_lea.vmem %s6, 32
  %1474 = vst.msk [vmem:[%s1473] sm:$0xff] %vm142, %v1471
  %1475 = vst.msk [vmem:[%s1473 + $0x8] sm:$0xff] %vm142, %v1472
  %1478 = vrot.lane.b32.xlu0 %v896, 64
  %v1479 = vpop.permute.xlu0 %1478
  %1480 = vrot.lane.b32.xlu0 %v897, 64
  %v1481 = vpop.permute.xlu0 %1480
  %1486 = vrot.lane.b32.xlu0 %v1025, 64
  %v1487 = vpop.permute.xlu0 %1486
  %1488 = vrot.lane.b32.xlu0 %v1026, 64
  %v1489 = vpop.permute.xlu0 %1488
  %v1492 = vsel %vm337, %v1479, %v1487
  %v1493 = vsel %vm337, %v1481, %v1489
  %s1494 = scalar_lea.vmem %s6, 48
  %1495 = vst.msk [vmem:[%s1494] sm:$0xff] %vm142, %v1492
  %1496 = vst.msk [vmem:[%s1494 + $0x8] sm:$0xff] %vm142, %v1493
  %v1497 = vsel %vm337, %v1487, %v1479
  %v1498 = vsel %vm337, %v1489, %v1481
  %s1499 = scalar_lea.vmem %s6, 64
  %1500 = vst.msk [vmem:[%s1499] sm:$0xff] %vm142, %v1497
  %1501 = vst.msk [vmem:[%s1499 + $0x8] sm:$0xff] %vm142, %v1498
  %v1502 = vsel %vm337, %v1466, %v1458
  %v1503 = vsel %vm337, %v1468, %v1460
  %s1504 = scalar_lea.vmem %s6, 80
  %1505 = vst.msk [vmem:[%s1504] sm:$0xff] %vm142, %v1502
  %1506 = vst.msk [vmem:[%s1504 + $0x8] sm:$0xff] %vm142, %v1503
  %v1507 = vsel %vm337, %v1445, %v1437
  %v1508 = vsel %vm337, %v1447, %v1439
  %s1509 = scalar_lea.vmem %s6, 96
  %1510 = vst.msk [vmem:[%s1509] sm:$0xff] %vm142, %v1507
  %1511 = vst.msk [vmem:[%s1509 + $0x8] sm:$0xff] %vm142, %v1508
  %v1512 = vsel %vm337, %v1425, %v1417
  %v1513 = vsel %vm337, %v1427, %v1419
  %s1514 = scalar_lea.vmem %s6, 112
  %1515 = vst.msk [vmem:[%s1514] sm:$0xff] %vm142, %v1512
  %1516 = vst.msk [vmem:[%s1514 + $0x8] sm:$0xff] %vm142, %v1513
  %1517 = vst.msk [vmem:[%s7] sm:$0xff] %vm142, %v1425
  %1518 = vst.msk [vmem:[%s7 + $0x8] sm:$0xff] %vm142, %v1427
  // Predicated region
  $region26: #{couplets_encode_forward.1} parent=0 // pred_check
    _
  $region27: #{couplets_encode_forward.1} parent=0 // pred_check_branch
    %1520 = sbr.rel (0) target = $region29
  $region28: #{couplets_encode_forward.1} parent=0 // pred_region
    _
  $region29: #{couplets_encode_forward.1} parent=0 // pred_fallthru
    _
  // Predicated region
  $region30: #{couplets_encode_forward.1} parent=0 // pred_check
    _
  $region31: #{couplets_encode_forward.1} parent=0 // pred_check_branch
    %1522 = sbr.rel (0) target = $region33
  $region32: #{couplets_encode_forward.1} parent=0 // pred_region
    _
  $region33: #{couplets_encode_forward.1} parent=0 // pred_fallthru
    _
  // Predicated region
  $region34: #{couplets_encode_forward.1} parent=0 // pred_check
    _
  $region35: #{couplets_encode_forward.1} parent=0 // pred_check_branch
    %1524 = sbr.rel (0) target = $region37
  $region36: #{couplets_encode_forward.1} parent=0 // pred_region
    _
  $region37: #{couplets_encode_forward.1} parent=0 // pred_fallthru
    _
  // Predicated region
  $region38: #{couplets_encode_forward.1} parent=0 // pred_check
    _
  $region39: #{couplets_encode_forward.1} parent=0 // pred_check_branch
    %1526 = sbr.rel (0) target = $region41
  $region40: #{couplets_encode_forward.1} parent=0 // pred_region
    _
  $region41: #{couplets_encode_forward.1} parent=0 // pred_fallthru
    _

</llo_original>
